<compile_context>
chip_gen: v5e
topology: v5e:2x2
jax: 0.10.0
libtpu: 0.0.40
codegen_flags: <defaults>
</compile_context>

<pallas_src>
import jax
import jax.numpy as jnp
from jax.experimental import pallas as pl
from jax.experimental.pallas import tpu as pltpu


HEAD_PAD = 128  # lane-dense width for the fc_ce / fc_sup outputs


def _pairsupcon_kernel(
    p_ref, h_ref, mrow_ref, mcol_ref,
    wproj_ref, bproj_ref,
    wpl_ref, bpl_ref,
    wpd_ref, bpd_ref,
    whead_ref, bhead_ref,
    wce_ref, bce_ref,
    wsup_ref, bsup_ref,
    ce_ref, sup_ref,
):
    """One grid step == one batch element (grid axis is 'parallel')."""
    f32 = jnp.float32
    bf16 = jnp.bfloat16

    P = p_ref[0]          # (S, D) f32 encoded "premises"  (segment-A view)
    H = h_ref[0]          # (S, D) f32 encoded "hypotheses" (segment-B view)
    m_row = mrow_ref[0]   # (1, S) f32 attention mask (key side)
    m_col = mcol_ref[0]   # (S, 1) f32 attention mask (query side)

    Pb = P.astype(bf16)
    Hb = H.astype(bf16)

    # similarity matrix and its transpose, bf16 operands -> f32 accumulation on the MXU
    dn = (((1,), (1,)), ((), ()))
    sim = jax.lax.dot_general(Pb, Hb, dn, preferred_element_type=f32)    # (Sp, Sh)
    sim_t = jax.lax.dot_general(Hb, Pb, dn, preferred_element_type=f32)  # (Sh, Sp)

    def masked_softmax(scores, mask):
        # ESIM masked_softmax: softmax(scores * mask) * mask, renormalised (+1e-13).
        x = scores * mask
        x = x - jnp.max(x, axis=-1, keepdims=True)
        e = jnp.exp(x)
        p = e / jnp.sum(e, axis=-1, keepdims=True)
        p = p * mask
        return p / (jnp.sum(p, axis=-1, keepdims=True) + 1e-13)

    attn_ph = masked_softmax(sim, m_row)    # premise -> hypothesis attention
    attn_hp = masked_softmax(sim_t, m_row)  # hypothesis -> premise attention

    # weighted_sum(...) multiplies by the query-side mask.
    att_p = jnp.dot(attn_ph.astype(bf16), Hb, preferred_element_type=f32) * m_col  # (S, D)
    att_h = jnp.dot(attn_hp.astype(bf16), Pb, preferred_element_type=f32) * m_col  # (S, D)

    # ESIM enhancement: lane-aligned concat (D=128 -> 4D=512 lanes), ONE fused matmul.
    enh_p = jnp.concatenate([P, att_p, P - att_p, P * att_p], axis=-1)  # (S, 4D)
    enh_h = jnp.concatenate([H, att_h, H - att_h, H * att_h], axis=-1)  # (S, 4D)

    wproj = wproj_ref[...]   # (4D, D) bf16
    bproj = bproj_ref[...]   # (1, D)  f32
    proj_p = jnp.maximum(
        jnp.dot(enh_p.astype(bf16), wproj, preferred_element_type=f32) + bproj, 0.0)
    proj_h = jnp.maximum(
        jnp.dot(enh_h.astype(bf16), wproj, preferred_element_type=f32) + bproj, 0.0)

    # Only token 0 (CLS) feeds the pooler / heads (BertPooler takes hidden_states[:, 0]).
    p0 = proj_p[0:1, :]                                                  # (1, D)
    h0 = proj_h[0:1, :]                                                  # (1, D)
    pair0 = jnp.concatenate([p0, h0, p0 - h0, p0 * h0], axis=-1)         # (1, 4D)

    t = jnp.dot(pair0.astype(bf16), wpl_ref[...], preferred_element_type=f32) + bpl_ref[...]
    pooled = jnp.tanh(
        jnp.dot(t.astype(bf16), wpd_ref[...], preferred_element_type=f32) + bpd_ref[...])
    feat = jnp.maximum(
        jnp.dot(pooled.astype(bf16), whead_ref[...], preferred_element_type=f32)
        + bhead_ref[...], 0.0)

    # fc_ce / fc_sup with zero-padded 128-lane outputs (padding does not change the norm).
    ce = jnp.dot(feat.astype(bf16), wce_ref[...], preferred_element_type=f32) + bce_ref[...]
    sup = jnp.dot(feat.astype(bf16), wsup_ref[...], preferred_element_type=f32) + bsup_ref[...]

    ce_n = ce / jnp.maximum(jnp.sqrt(jnp.sum(ce * ce, axis=-1, keepdims=True)), 1e-12)
    sup_n = sup / jnp.maximum(jnp.sqrt(jnp.sum(sup * sup, axis=-1, keepdims=True)), 1e-12)

    ce_ref[0] = ce_n     # (1, HEAD_PAD) lane-dense store
    sup_ref[0] = sup_n   # (1, HEAD_PAD) lane-dense store


def _pad_head(w, b, width):
    """Zero-pad a (D, n) weight / (n,) bias pair to `width` output columns."""
    wp = jnp.zeros((w.shape[0], width), w.dtype).at[:, : w.shape[1]].set(w)
    bp = jnp.zeros((width,), b.dtype).at[: b.shape[0]].set(b)
    return wp, bp


def pair_supcon_forward(input_ids, attention_mask, token_type_ids, params):
    """Forward pass of PairSupConBert (is_train=True): returns (ce_norm, sup_norm)."""
    B, S = input_ids.shape
    D = params["wproj_t"].shape[1]
    n_ce = params["wce_t"].shape[1]
    n_sup = params["wsup_t"].shape[1]

    # input id split done by the module itself.
    ids2 = input_ids * token_type_ids
    ids1 = input_ids - ids2

    # TODO(synk): stand-in for the pretrained BERT encoder (token + position embeddings only).
    def encode(ids):
        return (params["tok_emb"][ids] + params["pos_emb"][None, :S, :]).astype(jnp.float32)

    enc_p = encode(ids1)   # (B, S, D)
    enc_h = encode(ids2)   # (B, S, D)

    mask = attention_mask.astype(jnp.float32)
    m_row = mask.reshape(B, 1, S)
    m_col = mask.reshape(B, S, 1)

    bf16 = jnp.bfloat16
    wce_p, bce_p = _pad_head(params["wce_t"], params["bce"], HEAD_PAD)
    wsup_p, bsup_p = _pad_head(params["wsup_t"], params["bsup"], HEAD_PAD)

    def w(a):
        return a.astype(bf16)

    def b(a):
        return a.astype(jnp.float32).reshape(1, -1)

    def full(shape):
        return pl.BlockSpec(shape, lambda i: (0, 0))

    def per_b(s1, s2):
        return pl.BlockSpec((1, s1, s2), lambda i: (i, 0, 0))

    ce_full, sup_full = pl.pallas_call(
        _pairsupcon_kernel,
        out_shape=(
            jax.ShapeDtypeStruct((B, 1, HEAD_PAD), jnp.float32),
            jax.ShapeDtypeStruct((B, 1, HEAD_PAD), jnp.float32),
        ),
        grid_spec=pltpu.PrefetchScalarGridSpec(
            num_scalar_prefetch=0,
            grid=(B,),
            in_specs=[
                per_b(S, D),                              # encoded premises
                per_b(S, D),                              # encoded hypotheses
                per_b(1, S),                              # mask (row / key side)
                per_b(S, 1),                              # mask (col / query side)
                full((4 * D, D)), full((1, D)),           # projection Linear(4D->D)
                full((4 * D, D)), full((1, D)),           # pooler first Linear(4D->D)
                full((D, D)), full((1, D)),               # BertPooler dense(D->D)
                full((D, D)), full((1, D)),               # head Linear(D->D)
                full((D, HEAD_PAD)), full((1, HEAD_PAD)),  # fc_ce (padded)
                full((D, HEAD_PAD)), full((1, HEAD_PAD)),  # fc_sup (padded)
            ],
            out_specs=[
                pl.BlockSpec((1, 1, HEAD_PAD), lambda i: (i, 0, 0)),
                pl.BlockSpec((1, 1, HEAD_PAD), lambda i: (i, 0, 0)),
            ],
        ),
        compiler_params=pltpu.CompilerParams(
            dimension_semantics=("parallel",),   # batch axis shards across TCs on v7x
        ),
    )(
        enc_p, enc_h, m_row, m_col,
        w(params["wproj_t"]), b(params["bproj"]),
        w(params["wpl_t"]), b(params["bpl"]),
        w(params["wpd_t"]), b(params["bpd"]),
        w(params["whead_t"]), b(params["bhead"]),
        w(wce_p), b(bce_p),
        w(wsup_p), b(bsup_p),
    )

    ce_norm = ce_full[:, 0, :n_ce]
    sup_norm = sup_full[:, 0, :n_sup]
    return ce_norm, sup_norm


def _reference(enc_p, enc_h, mask, params):
    """Pure-JAX reference of the same math (same bf16 matmul casts, f32 elsewhere)."""
    bf16, f32 = jnp.bfloat16, jnp.float32
    P, H = enc_p, enc_h
    Pb, Hb = P.astype(bf16), H.astype(bf16)
    sim = jnp.einsum("bpd,bhd->bph", Pb, Hb, preferred_element_type=f32)
    sim_t = jnp.einsum("bhd,bpd->bhp", Hb, Pb, preferred_element_type=f32)
    m_row = mask[:, None, :]
    m_col = mask[:, :, None]

    def msoft(scores, m):
        x = scores * m
        x = x - jnp.max(x, axis=-1, keepdims=True)
        e = jnp.exp(x)
        p = e / jnp.sum(e, axis=-1, keepdims=True)
        p = p * m
        return p / (jnp.sum(p, axis=-1, keepdims=True) + 1e-13)

    attn_ph = msoft(sim, m_row)
    attn_hp = msoft(sim_t, m_row)
    att_p = jnp.einsum("bph,bhd->bpd", attn_ph.astype(bf16), Hb,
                       preferred_element_type=f32) * m_col
    att_h = jnp.einsum("bhp,bpd->bhd", attn_hp.astype(bf16), Pb,
                       preferred_element_type=f32) * m_col

    enh_p = jnp.concatenate([P, att_p, P - att_p, P * att_p], axis=-1)
    enh_h = jnp.concatenate([H, att_h, H - att_h, H * att_h], axis=-1)
    wproj = params["wproj_t"].astype(bf16)

    def proj(e):
        return jnp.maximum(
            jnp.einsum("bsd,df->bsf", e.astype(bf16), wproj,
                       preferred_element_type=f32) + params["bproj"], 0.0)

    proj_p, proj_h = proj(enh_p), proj(enh_h)
    p0, h0 = proj_p[:, 0, :], proj_h[:, 0, :]
    pair0 = jnp.concatenate([p0, h0, p0 - h0, p0 * h0], axis=-1)

    def lin(x, wn, bn):
        return (jnp.dot(x.astype(bf16), params[wn].astype(bf16),
                        preferred_element_type=f32) + params[bn])

    t = lin(pair0, "wpl_t", "bpl")
    pooled = jnp.tanh(lin(t, "wpd_t", "bpd"))
    feat = jnp.maximum(lin(pooled, "whead_t", "bhead"), 0.0)
    ce = lin(feat, "wce_t", "bce")
    sup = lin(feat, "wsup_t", "bsup")

    def nrm(x):
        return x / jnp.maximum(jnp.linalg.norm(x, axis=-1, keepdims=True), 1e-12)

    return nrm(ce), nrm(sup)


if __name__ == "__main__":
    B, S, D = 2, 16, 128         # batch, sequence length, dim_mlp (BERT hidden size)
    VOCAB, N_SUP, N_CE = 50, 8, 3

    key = jax.random.PRNGKey(0)
    ks = jax.random.split(key, 16)

    def uni(k, shape, fan_in):
        bound = 1.0 / (fan_in ** 0.5)
        return jax.random.uniform(k, shape, jnp.float32, -bound, bound)

    params = {
        "tok_emb": 0.5 * jax.random.normal(ks[0], (VOCAB, D), jnp.float32),
        "pos_emb": 0.1 * jax.random.normal(ks[1], (S, D), jnp.float32),
        "wproj_t": uni(ks[2], (4 * D, D), 4 * D), "bproj": uni(ks[3], (D,), 4 * D),
        "wpl_t":   uni(ks[4], (4 * D, D), 4 * D), "bpl":   uni(ks[5], (D,), 4 * D),
        "wpd_t":   uni(ks[6], (D, D), D),         "bpd":   uni(ks[7], (D,), D),
        "whead_t": uni(ks[8], (D, D), D),         "bhead": uni(ks[9], (D,), D),
        "wce_t":   uni(ks[10], (D, N_CE), D),     "bce":   uni(ks[11], (N_CE,), D),
        "wsup_t":  uni(ks[12], (D, N_SUP), D),    "bsup":  uni(ks[13], (N_SUP,), D),
    }

    # Inputs: input_ids, attention_mask, token_type_ids (segment B = second half).
    input_ids = jax.random.randint(ks[14], (B, S), 1, VOCAB).astype(jnp.int32)
    lengths = jnp.array([S, 11], dtype=jnp.int32)
    attention_mask = (jnp.arange(S)[None, :] < lengths[:, None]).astype(jnp.float32)
    token_type_ids = jnp.broadcast_to(
        (jnp.arange(S) >= S // 2).astype(jnp.int32), (B, S))

    fwd = jax.jit(pair_supcon_forward)
    ce_n, sup_n = fwd(input_ids, attention_mask, token_type_ids, params)
    ce_n = jax.block_until_ready(ce_n)
    sup_n = jax.block_until_ready(sup_n)

    # Reference check (same stand-in encoder feeding the pure-JAX pipeline).
    ids2 = input_ids * token_type_ids
    ids1 = input_ids - ids2
    enc_p = params["tok_emb"][ids1] + params["pos_emb"][None]
    enc_h = params["tok_emb"][ids2] + params["pos_emb"][None]
    ce_ref, sup_ref = _reference(enc_p, enc_h, attention_mask, params)

    assert ce_n.shape == (B, N_CE) and sup_n.shape == (B, N_SUP)
    assert jnp.allclose(ce_n, ce_ref, atol=1e-2, rtol=1e-2), "fc_ce output mismatch"
    assert jnp.allclose(sup_n, sup_ref, atol=1e-2, rtol=1e-2), "fc_sup output mismatch"

    print("KERNEL_OK")
</pallas_src>

<mosaic_0001>
module attributes {stable_mosaic.version = 11 : i64} {
  func.func @_pairsupcon_kernel(%arg0: i32, %arg1: memref<1x16x128xf32, #tpu.memory_space<vmem>>, %arg2: memref<1x16x128xf32, #tpu.memory_space<vmem>>, %arg3: memref<1x1x16xf32, #tpu.memory_space<vmem>>, %arg4: memref<1x16x1xf32, #tpu.memory_space<vmem>>, %arg5: memref<512x128xbf16, #tpu.memory_space<vmem>>, %arg6: memref<1x128xf32, #tpu.memory_space<vmem>>, %arg7: memref<512x128xbf16, #tpu.memory_space<vmem>>, %arg8: memref<1x128xf32, #tpu.memory_space<vmem>>, %arg9: memref<128x128xbf16, #tpu.memory_space<vmem>>, %arg10: memref<1x128xf32, #tpu.memory_space<vmem>>, %arg11: memref<128x128xbf16, #tpu.memory_space<vmem>>, %arg12: memref<1x128xf32, #tpu.memory_space<vmem>>, %arg13: memref<128x128xbf16, #tpu.memory_space<vmem>>, %arg14: memref<1x128xf32, #tpu.memory_space<vmem>>, %arg15: memref<128x128xbf16, #tpu.memory_space<vmem>>, %arg16: memref<1x128xf32, #tpu.memory_space<vmem>>, %arg17: memref<1x1x128xf32, #tpu.memory_space<vmem>>, %arg18: memref<1x1x128xf32, #tpu.memory_space<vmem>>) attributes {dimension_semantics = [#tpu.dimension_semantics<parallel>], iteration_bounds = array<i64: 2>, scalar_prefetch = 0 : i64, scratch_operands = 0 : i64, tpu.core_type = #tpu.core_type<tc>, window_params = [{transform_indices = @transform_0, window_bounds = array<i64: 1, 16, 128>}, {transform_indices = @transform_1, window_bounds = array<i64: 1, 16, 128>}, {transform_indices = @transform_2, window_bounds = array<i64: 1, 1, 16>}, {transform_indices = @transform_3, window_bounds = array<i64: 1, 16, 1>}, {pipeline_mode = #tpu.pipeline_mode<synchronous>, transform_indices = @transform_4, window_bounds = array<i64: 512, 128>}, {pipeline_mode = #tpu.pipeline_mode<synchronous>, transform_indices = @transform_5, window_bounds = array<i64: 1, 128>}, {pipeline_mode = #tpu.pipeline_mode<synchronous>, transform_indices = @transform_6, window_bounds = array<i64: 512, 128>}, {pipeline_mode = #tpu.pipeline_mode<synchronous>, transform_indices = @transform_7, window_bounds = array<i64: 1, 128>}, {pipeline_mode = #tpu.pipeline_mode<synchronous>, transform_indices = @transform_8, window_bounds = array<i64: 128, 128>}, {pipeline_mode = #tpu.pipeline_mode<synchronous>, transform_indices = @transform_9, window_bounds = array<i64: 1, 128>}, {pipeline_mode = #tpu.pipeline_mode<synchronous>, transform_indices = @transform_10, window_bounds = array<i64: 128, 128>}, {pipeline_mode = #tpu.pipeline_mode<synchronous>, transform_indices = @transform_11, window_bounds = array<i64: 1, 128>}, {pipeline_mode = #tpu.pipeline_mode<synchronous>, transform_indices = @transform_12, window_bounds = array<i64: 128, 128>}, {pipeline_mode = #tpu.pipeline_mode<synchronous>, transform_indices = @transform_13, window_bounds = array<i64: 1, 128>}, {pipeline_mode = #tpu.pipeline_mode<synchronous>, transform_indices = @transform_14, window_bounds = array<i64: 128, 128>}, {pipeline_mode = #tpu.pipeline_mode<synchronous>, transform_indices = @transform_15, window_bounds = array<i64: 1, 128>}, {transform_indices = @transform_16, window_bounds = array<i64: 1, 1, 128>}, {transform_indices = @transform_17, window_bounds = array<i64: 1, 1, 128>}]} {
    %c0 = arith.constant 0 : index
    %c0_0 = arith.constant 0 : index
    %c0_1 = arith.constant 0 : index
    %0 = vector.load %arg1[%c0, %c0_0, %c0_1] : memref<1x16x128xf32, #tpu.memory_space<vmem>>, vector<1x16x128xf32>
    %1 = vector.shape_cast %0 : vector<1x16x128xf32> to vector<16x128xf32>
    %c0_2 = arith.constant 0 : index
    %c0_3 = arith.constant 0 : index
    %c0_4 = arith.constant 0 : index
    %2 = vector.load %arg2[%c0_2, %c0_3, %c0_4] : memref<1x16x128xf32, #tpu.memory_space<vmem>>, vector<1x16x128xf32>
    %3 = vector.shape_cast %2 : vector<1x16x128xf32> to vector<16x128xf32>
    %c0_5 = arith.constant 0 : index
    %c0_6 = arith.constant 0 : index
    %c0_7 = arith.constant 0 : index
    %4 = vector.load %arg3[%c0_5, %c0_6, %c0_7] : memref<1x1x16xf32, #tpu.memory_space<vmem>>, vector<1x1x16xf32>
    %5 = vector.shape_cast %4 : vector<1x1x16xf32> to vector<1x16xf32>
    %c0_8 = arith.constant 0 : index
    %c0_9 = arith.constant 0 : index
    %c0_10 = arith.constant 0 : index
    %6 = vector.load %arg4[%c0_8, %c0_9, %c0_10] : memref<1x16x1xf32, #tpu.memory_space<vmem>>, vector<1x16x1xf32>
    %7 = vector.shape_cast %6 : vector<1x16x1xf32> to vector<16x1xf32>
    %8 = arith.truncf %1 : vector<16x128xf32> to vector<16x128xbf16>
    %9 = arith.truncf %3 : vector<16x128xf32> to vector<16x128xbf16>
    %cst = arith.constant dense<0.000000e+00> : vector<16x16xf32>
    %10 = tpu.matmul %8, %9, %cst {dimension_numbers = #tpu.dot_dimension_numbers<[1], [1], [0], [0], [0, 0, 1, 0], [], []>} : vector<16x128xbf16>, vector<16x128xbf16>, vector<16x16xf32> -> vector<16x16xf32>
    %cst_11 = arith.constant dense<0.000000e+00> : vector<16x16xf32>
    %11 = tpu.matmul %9, %8, %cst_11 {dimension_numbers = #tpu.dot_dimension_numbers<[1], [1], [0], [0], [0, 0, 1, 0], [], []>} : vector<16x128xbf16>, vector<16x128xbf16>, vector<16x16xf32> -> vector<16x16xf32>
    %12 = vector.broadcast %5 : vector<1x16xf32> to vector<16x16xf32>
    %13 = arith.mulf %10, %12 : vector<16x16xf32>
    %cst_12 = arith.constant dense<0xFF800000> : vector<16xf32>
    %14 = vector.multi_reduction <maximumf>, %13, %cst_12 [1] : vector<16x16xf32> to vector<16xf32>
    %15 = vector.shape_cast %14 : vector<16xf32> to vector<16x1xf32>
    %16 = vector.broadcast %15 : vector<16x1xf32> to vector<16x16xf32>
    %17 = arith.subf %13, %16 : vector<16x16xf32>
    %18 = math.exp %17 : vector<16x16xf32>
    %cst_13 = arith.constant dense<0.000000e+00> : vector<16xf32>
    %19 = vector.multi_reduction <add>, %18, %cst_13 [1] : vector<16x16xf32> to vector<16xf32>
    %20 = vector.shape_cast %19 : vector<16xf32> to vector<16x1xf32>
    %21 = vector.broadcast %20 : vector<16x1xf32> to vector<16x16xf32>
    %22 = arith.divf %18, %21 : vector<16x16xf32>
    %23 = vector.broadcast %5 : vector<1x16xf32> to vector<16x16xf32>
    %24 = arith.mulf %22, %23 : vector<16x16xf32>
    %cst_14 = arith.constant dense<0.000000e+00> : vector<16xf32>
    %25 = vector.multi_reduction <add>, %24, %cst_14 [1] : vector<16x16xf32> to vector<16xf32>
    %26 = vector.shape_cast %25 : vector<16xf32> to vector<16x1xf32>
    %cst_15 = arith.constant 9.99999982E-14 : f32
    %27 = vector.broadcast %cst_15 : f32 to vector<16x1xf32>
    %28 = arith.addf %26, %27 : vector<16x1xf32>
    %29 = vector.broadcast %28 : vector<16x1xf32> to vector<16x16xf32>
    %30 = arith.divf %24, %29 : vector<16x16xf32>
    %31 = vector.broadcast %5 : vector<1x16xf32> to vector<16x16xf32>
    %32 = arith.mulf %11, %31 : vector<16x16xf32>
    %cst_16 = arith.constant dense<0xFF800000> : vector<16xf32>
    %33 = vector.multi_reduction <maximumf>, %32, %cst_16 [1] : vector<16x16xf32> to vector<16xf32>
    %34 = vector.shape_cast %33 : vector<16xf32> to vector<16x1xf32>
    %35 = vector.broadcast %34 : vector<16x1xf32> to vector<16x16xf32>
    %36 = arith.subf %32, %35 : vector<16x16xf32>
    %37 = math.exp %36 : vector<16x16xf32>
    %cst_17 = arith.constant dense<0.000000e+00> : vector<16xf32>
    %38 = vector.multi_reduction <add>, %37, %cst_17 [1] : vector<16x16xf32> to vector<16xf32>
    %39 = vector.shape_cast %38 : vector<16xf32> to vector<16x1xf32>
    %40 = vector.broadcast %39 : vector<16x1xf32> to vector<16x16xf32>
    %41 = arith.divf %37, %40 : vector<16x16xf32>
    %42 = vector.broadcast %5 : vector<1x16xf32> to vector<16x16xf32>
    %43 = arith.mulf %41, %42 : vector<16x16xf32>
    %cst_18 = arith.constant dense<0.000000e+00> : vector<16xf32>
    %44 = vector.multi_reduction <add>, %43, %cst_18 [1] : vector<16x16xf32> to vector<16xf32>
    %45 = vector.shape_cast %44 : vector<16xf32> to vector<16x1xf32>
    %cst_19 = arith.constant 9.99999982E-14 : f32
    %46 = vector.broadcast %cst_19 : f32 to vector<16x1xf32>
    %47 = arith.addf %45, %46 : vector<16x1xf32>
    %48 = vector.broadcast %47 : vector<16x1xf32> to vector<16x16xf32>
    %49 = arith.divf %43, %48 : vector<16x16xf32>
    %50 = arith.truncf %30 : vector<16x16xf32> to vector<16x16xbf16>
    %cst_20 = arith.constant dense<0.000000e+00> : vector<16x128xf32>
    %51 = tpu.matmul %50, %9, %cst_20 {dimension_numbers = #tpu.dot_dimension_numbers<[1], [0], [0], [1], [0, 0, 1, 1], [], []>} : vector<16x16xbf16>, vector<16x128xbf16>, vector<16x128xf32> -> vector<16x128xf32>
    %52 = vector.broadcast %7 : vector<16x1xf32> to vector<16x128xf32>
    %53 = arith.mulf %51, %52 : vector<16x128xf32>
    %54 = arith.truncf %49 : vector<16x16xf32> to vector<16x16xbf16>
    %cst_21 = arith.constant dense<0.000000e+00> : vector<16x128xf32>
    %55 = tpu.matmul %54, %8, %cst_21 {dimension_numbers = #tpu.dot_dimension_numbers<[1], [0], [0], [1], [0, 0, 1, 1], [], []>} : vector<16x16xbf16>, vector<16x128xbf16>, vector<16x128xf32> -> vector<16x128xf32>
    %56 = vector.broadcast %7 : vector<16x1xf32> to vector<16x128xf32>
    %57 = arith.mulf %55, %56 : vector<16x128xf32>
    %58 = arith.subf %1, %53 : vector<16x128xf32>
    %59 = arith.mulf %1, %53 : vector<16x128xf32>
    %60 = tpu.concatenate %1, %53, %58, %59 in 1 : vector<16x128xf32>, vector<16x128xf32>, vector<16x128xf32>, vector<16x128xf32> -> vector<16x512xf32>
    %61 = arith.subf %3, %57 : vector<16x128xf32>
    %62 = arith.mulf %3, %57 : vector<16x128xf32>
    %63 = tpu.concatenate %3, %57, %61, %62 in 1 : vector<16x128xf32>, vector<16x128xf32>, vector<16x128xf32>, vector<16x128xf32> -> vector<16x512xf32>
    %c0_22 = arith.constant 0 : index
    %c0_23 = arith.constant 0 : index
    %64 = vector.load %arg5[%c0_22, %c0_23] : memref<512x128xbf16, #tpu.memory_space<vmem>>, vector<512x128xbf16>
    %c0_24 = arith.constant 0 : index
    %c0_25 = arith.constant 0 : index
    %65 = vector.load %arg6[%c0_24, %c0_25] : memref<1x128xf32, #tpu.memory_space<vmem>>, vector<1x128xf32>
    %66 = arith.truncf %60 : vector<16x512xf32> to vector<16x512xbf16>
    %cst_26 = arith.constant dense<0.000000e+00> : vector<16x128xf32>
    %67 = tpu.matmul %66, %64, %cst_26 {dimension_numbers = #tpu.dot_dimension_numbers<[1], [0], [0], [1], [0, 0, 1, 1], [], []>} : vector<16x512xbf16>, vector<512x128xbf16>, vector<16x128xf32> -> vector<16x128xf32>
    %68 = vector.broadcast %65 : vector<1x128xf32> to vector<16x128xf32>
    %69 = arith.addf %67, %68 : vector<16x128xf32>
    %cst_27 = arith.constant 0.000000e+00 : f32
    %70 = vector.broadcast %cst_27 : f32 to vector<16x128xf32>
    %71 = arith.maximumf %69, %70 : vector<16x128xf32>
    %72 = arith.truncf %63 : vector<16x512xf32> to vector<16x512xbf16>
    %cst_28 = arith.constant dense<0.000000e+00> : vector<16x128xf32>
    %73 = tpu.matmul %72, %64, %cst_28 {dimension_numbers = #tpu.dot_dimension_numbers<[1], [0], [0], [1], [0, 0, 1, 1], [], []>} : vector<16x512xbf16>, vector<512x128xbf16>, vector<16x128xf32> -> vector<16x128xf32>
    %74 = vector.broadcast %65 : vector<1x128xf32> to vector<16x128xf32>
    %75 = arith.addf %73, %74 : vector<16x128xf32>
    %cst_29 = arith.constant 0.000000e+00 : f32
    %76 = vector.broadcast %cst_29 : f32 to vector<16x128xf32>
    %77 = arith.maximumf %75, %76 : vector<16x128xf32>
    %78 = vector.extract_strided_slice %71 {offsets = [0, 0], sizes = [1, 128], strides = [1, 1]} : vector<16x128xf32> to vector<1x128xf32>
    %79 = vector.extract_strided_slice %77 {offsets = [0, 0], sizes = [1, 128], strides = [1, 1]} : vector<16x128xf32> to vector<1x128xf32>
    %80 = arith.subf %78, %79 : vector<1x128xf32>
    %81 = arith.mulf %78, %79 : vector<1x128xf32>
    %82 = tpu.concatenate %78, %79, %80, %81 in 1 : vector<1x128xf32>, vector<1x128xf32>, vector<1x128xf32>, vector<1x128xf32> -> vector<1x512xf32>
    %83 = arith.truncf %82 : vector<1x512xf32> to vector<1x512xbf16>
    %c0_30 = arith.constant 0 : index
    %c0_31 = arith.constant 0 : index
    %84 = vector.load %arg7[%c0_30, %c0_31] : memref<512x128xbf16, #tpu.memory_space<vmem>>, vector<512x128xbf16>
    %cst_32 = arith.constant dense<0.000000e+00> : vector<1x128xf32>
    %85 = tpu.matmul %83, %84, %cst_32 {dimension_numbers = #tpu.dot_dimension_numbers<[1], [0], [0], [1], [0, 0, 1, 1], [], []>} : vector<1x512xbf16>, vector<512x128xbf16>, vector<1x128xf32> -> vector<1x128xf32>
    %c0_33 = arith.constant 0 : index
    %c0_34 = arith.constant 0 : index
    %86 = vector.load %arg8[%c0_33, %c0_34] : memref<1x128xf32, #tpu.memory_space<vmem>>, vector<1x128xf32>
    %87 = arith.addf %85, %86 : vector<1x128xf32>
    %88 = arith.truncf %87 : vector<1x128xf32> to vector<1x128xbf16>
    %c0_35 = arith.constant 0 : index
    %c0_36 = arith.constant 0 : index
    %89 = vector.load %arg9[%c0_35, %c0_36] : memref<128x128xbf16, #tpu.memory_space<vmem>>, vector<128x128xbf16>
    %cst_37 = arith.constant dense<0.000000e+00> : vector<1x128xf32>
    %90 = tpu.matmul %88, %89, %cst_37 {dimension_numbers = #tpu.dot_dimension_numbers<[1], [0], [0], [1], [0, 0, 1, 1], [], []>} : vector<1x128xbf16>, vector<128x128xbf16>, vector<1x128xf32> -> vector<1x128xf32>
    %c0_38 = arith.constant 0 : index
    %c0_39 = arith.constant 0 : index
    %91 = vector.load %arg10[%c0_38, %c0_39] : memref<1x128xf32, #tpu.memory_space<vmem>>, vector<1x128xf32>
    %92 = arith.addf %90, %91 : vector<1x128xf32>
    %93 = math.tanh %92 : vector<1x128xf32>
    %94 = arith.truncf %93 : vector<1x128xf32> to vector<1x128xbf16>
    %c0_40 = arith.constant 0 : index
    %c0_41 = arith.constant 0 : index
    %95 = vector.load %arg11[%c0_40, %c0_41] : memref<128x128xbf16, #tpu.memory_space<vmem>>, vector<128x128xbf16>
    %cst_42 = arith.constant dense<0.000000e+00> : vector<1x128xf32>
    %96 = tpu.matmul %94, %95, %cst_42 {dimension_numbers = #tpu.dot_dimension_numbers<[1], [0], [0], [1], [0, 0, 1, 1], [], []>} : vector<1x128xbf16>, vector<128x128xbf16>, vector<1x128xf32> -> vector<1x128xf32>
    %c0_43 = arith.constant 0 : index
    %c0_44 = arith.constant 0 : index
    %97 = vector.load %arg12[%c0_43, %c0_44] : memref<1x128xf32, #tpu.memory_space<vmem>>, vector<1x128xf32>
    %98 = arith.addf %96, %97 : vector<1x128xf32>
    %cst_45 = arith.constant 0.000000e+00 : f32
    %99 = vector.broadcast %cst_45 : f32 to vector<1x128xf32>
    %100 = arith.maximumf %98, %99 : vector<1x128xf32>
    %101 = arith.truncf %100 : vector<1x128xf32> to vector<1x128xbf16>
    %c0_46 = arith.constant 0 : index
    %c0_47 = arith.constant 0 : index
    %102 = vector.load %arg13[%c0_46, %c0_47] : memref<128x128xbf16, #tpu.memory_space<vmem>>, vector<128x128xbf16>
    %cst_48 = arith.constant dense<0.000000e+00> : vector<1x128xf32>
    %103 = tpu.matmul %101, %102, %cst_48 {dimension_numbers = #tpu.dot_dimension_numbers<[1], [0], [0], [1], [0, 0, 1, 1], [], []>} : vector<1x128xbf16>, vector<128x128xbf16>, vector<1x128xf32> -> vector<1x128xf32>
    %c0_49 = arith.constant 0 : index
    %c0_50 = arith.constant 0 : index
    %104 = vector.load %arg14[%c0_49, %c0_50] : memref<1x128xf32, #tpu.memory_space<vmem>>, vector<1x128xf32>
    %105 = arith.addf %103, %104 : vector<1x128xf32>
    %106 = arith.truncf %100 : vector<1x128xf32> to vector<1x128xbf16>
    %c0_51 = arith.constant 0 : index
    %c0_52 = arith.constant 0 : index
    %107 = vector.load %arg15[%c0_51, %c0_52] : memref<128x128xbf16, #tpu.memory_space<vmem>>, vector<128x128xbf16>
    %cst_53 = arith.constant dense<0.000000e+00> : vector<1x128xf32>
    %108 = tpu.matmul %106, %107, %cst_53 {dimension_numbers = #tpu.dot_dimension_numbers<[1], [0], [0], [1], [0, 0, 1, 1], [], []>} : vector<1x128xbf16>, vector<128x128xbf16>, vector<1x128xf32> -> vector<1x128xf32>
    %c0_54 = arith.constant 0 : index
    %c0_55 = arith.constant 0 : index
    %109 = vector.load %arg16[%c0_54, %c0_55] : memref<1x128xf32, #tpu.memory_space<vmem>>, vector<1x128xf32>
    %110 = arith.addf %108, %109 : vector<1x128xf32>
    %111 = arith.mulf %105, %105 : vector<1x128xf32>
    %cst_56 = arith.constant dense<0.000000e+00> : vector<1xf32>
    %112 = vector.multi_reduction <add>, %111, %cst_56 [1] : vector<1x128xf32> to vector<1xf32>
    %113 = vector.shape_cast %112 : vector<1xf32> to vector<1x1xf32>
    %114 = math.sqrt %113 : vector<1x1xf32>
    %cst_57 = arith.constant 9.99999996E-13 : f32
    %115 = vector.broadcast %cst_57 : f32 to vector<1x1xf32>
    %116 = arith.maximumf %114, %115 : vector<1x1xf32>
    %117 = vector.broadcast %116 : vector<1x1xf32> to vector<1x128xf32>
    %118 = arith.divf %105, %117 : vector<1x128xf32>
    %119 = arith.mulf %110, %110 : vector<1x128xf32>
    %cst_58 = arith.constant dense<0.000000e+00> : vector<1xf32>
    %120 = vector.multi_reduction <add>, %119, %cst_58 [1] : vector<1x128xf32> to vector<1xf32>
    %121 = vector.shape_cast %120 : vector<1xf32> to vector<1x1xf32>
    %122 = math.sqrt %121 : vector<1x1xf32>
    %cst_59 = arith.constant 9.99999996E-13 : f32
    %123 = vector.broadcast %cst_59 : f32 to vector<1x1xf32>
    %124 = arith.maximumf %122, %123 : vector<1x1xf32>
    %125 = vector.broadcast %124 : vector<1x1xf32> to vector<1x128xf32>
    %126 = arith.divf %110, %125 : vector<1x128xf32>
    %c0_60 = arith.constant 0 : index
    %c0_61 = arith.constant 0 : index
    %c0_62 = arith.constant 0 : index
    %127 = vector.load %arg17[%c0_60, %c0_61, %c0_62] : memref<1x1x128xf32, #tpu.memory_space<vmem>>, vector<1x1x128xf32>
    %128 = vector.shape_cast %127 : vector<1x1x128xf32> to vector<1x128xf32>
    %129 = vector.shape_cast %118 : vector<1x128xf32> to vector<1x1x128xf32>
    tpu.vector_store %arg17[%c0_60, %c0_61, %c0_62], %129 {strides = array<i32>} : memref<1x1x128xf32, #tpu.memory_space<vmem>>, vector<1x1x128xf32>,
    %c0_63 = arith.constant 0 : index
    %c0_64 = arith.constant 0 : index
    %c0_65 = arith.constant 0 : index
    %130 = vector.load %arg18[%c0_63, %c0_64, %c0_65] : memref<1x1x128xf32, #tpu.memory_space<vmem>>, vector<1x1x128xf32>
    %131 = vector.shape_cast %130 : vector<1x1x128xf32> to vector<1x128xf32>
    %132 = vector.shape_cast %126 : vector<1x128xf32> to vector<1x1x128xf32>
    tpu.vector_store %arg18[%c0_63, %c0_64, %c0_65], %132 {strides = array<i32>} : memref<1x1x128xf32, #tpu.memory_space<vmem>>, vector<1x1x128xf32>,
    return
  }
  func.func @transform_0(%arg0: i32) -> (i32, i32, i32) {
    %c0_i32 = arith.constant 0 : i32
    %c0_i32_0 = arith.constant 0 : i32
    %c0_i32_1 = arith.constant 0 : i32
    return %arg0, %c0_i32, %c0_i32_0 : i32, i32, i32
  }
  func.func @transform_1(%arg0: i32) -> (i32, i32, i32) {
    %c0_i32 = arith.constant 0 : i32
    %c0_i32_0 = arith.constant 0 : i32
    %c0_i32_1 = arith.constant 0 : i32
    return %arg0, %c0_i32, %c0_i32_0 : i32, i32, i32
  }
  func.func @transform_2(%arg0: i32) -> (i32, i32, i32) {
    %c0_i32 = arith.constant 0 : i32
    %c0_i32_0 = arith.constant 0 : i32
    %c0_i32_1 = arith.constant 0 : i32
    return %arg0, %c0_i32, %c0_i32_0 : i32, i32, i32
  }
  func.func @transform_3(%arg0: i32) -> (i32, i32, i32) {
    %c0_i32 = arith.constant 0 : i32
    %c0_i32_0 = arith.constant 0 : i32
    %c0_i32_1 = arith.constant 0 : i32
    return %arg0, %c0_i32, %c0_i32_0 : i32, i32, i32
  }
  func.func @transform_4(%arg0: i32) -> (i32, i32) {
    %c0_i32 = arith.constant 0 : i32
    %c0_i32_0 = arith.constant 0 : i32
    %c0_i32_1 = arith.constant 0 : i32
    return %c0_i32, %c0_i32_0 : i32, i32
  }
  func.func @transform_5(%arg0: i32) -> (i32, i32) {
    %c0_i32 = arith.constant 0 : i32
    %c0_i32_0 = arith.constant 0 : i32
    %c0_i32_1 = arith.constant 0 : i32
    return %c0_i32, %c0_i32_0 : i32, i32
  }
  func.func @transform_6(%arg0: i32) -> (i32, i32) {
    %c0_i32 = arith.constant 0 : i32
    %c0_i32_0 = arith.constant 0 : i32
    %c0_i32_1 = arith.constant 0 : i32
    return %c0_i32, %c0_i32_0 : i32, i32
  }
  func.func @transform_7(%arg0: i32) -> (i32, i32) {
    %c0_i32 = arith.constant 0 : i32
    %c0_i32_0 = arith.constant 0 : i32
    %c0_i32_1 = arith.constant 0 : i32
    return %c0_i32, %c0_i32_0 : i32, i32
  }
  func.func @transform_8(%arg0: i32) -> (i32, i32) {
    %c0_i32 = arith.constant 0 : i32
    %c0_i32_0 = arith.constant 0 : i32
    %c0_i32_1 = arith.constant 0 : i32
    return %c0_i32, %c0_i32_0 : i32, i32
  }
  func.func @transform_9(%arg0: i32) -> (i32, i32) {
    %c0_i32 = arith.constant 0 : i32
    %c0_i32_0 = arith.constant 0 : i32
    %c0_i32_1 = arith.constant 0 : i32
    return %c0_i32, %c0_i32_0 : i32, i32
  }
  func.func @transform_10(%arg0: i32) -> (i32, i32) {
    %c0_i32 = arith.constant 0 : i32
    %c0_i32_0 = arith.constant 0 : i32
    %c0_i32_1 = arith.constant 0 : i32
    return %c0_i32, %c0_i32_0 : i32, i32
  }
  func.func @transform_11(%arg0: i32) -> (i32, i32) {
    %c0_i32 = arith.constant 0 : i32
    %c0_i32_0 = arith.constant 0 : i32
    %c0_i32_1 = arith.constant 0 : i32
    return %c0_i32, %c0_i32_0 : i32, i32
  }
  func.func @transform_12(%arg0: i32) -> (i32, i32) {
    %c0_i32 = arith.constant 0 : i32
    %c0_i32_0 = arith.constant 0 : i32
    %c0_i32_1 = arith.constant 0 : i32
    return %c0_i32, %c0_i32_0 : i32, i32
  }
  func.func @transform_13(%arg0: i32) -> (i32, i32) {
    %c0_i32 = arith.constant 0 : i32
    %c0_i32_0 = arith.constant 0 : i32
    %c0_i32_1 = arith.constant 0 : i32
    return %c0_i32, %c0_i32_0 : i32, i32
  }
  func.func @transform_14(%arg0: i32) -> (i32, i32) {
    %c0_i32 = arith.constant 0 : i32
    %c0_i32_0 = arith.constant 0 : i32
    %c0_i32_1 = arith.constant 0 : i32
    return %c0_i32, %c0_i32_0 : i32, i32
  }
  func.func @transform_15(%arg0: i32) -> (i32, i32) {
    %c0_i32 = arith.constant 0 : i32
    %c0_i32_0 = arith.constant 0 : i32
    %c0_i32_1 = arith.constant 0 : i32
    return %c0_i32, %c0_i32_0 : i32, i32
  }
  func.func @transform_16(%arg0: i32) -> (i32, i32, i32) {
    %c0_i32 = arith.constant 0 : i32
    %c0_i32_0 = arith.constant 0 : i32
    %c0_i32_1 = arith.constant 0 : i32
    return %arg0, %c0_i32, %c0_i32_0 : i32, i32, i32
  }
  func.func @transform_17(%arg0: i32) -> (i32, i32, i32) {
    %c0_i32 = arith.constant 0 : i32
    %c0_i32_0 = arith.constant 0 : i32
    %c0_i32_1 = arith.constant 0 : i32
    return %arg0, %c0_i32, %c0_i32_0 : i32, i32, i32
  }
}

</mosaic_0001>

<llo_original>
// kernel: pair_supcon_forward.1
$region0: #{pair_supcon_forward.1}
  #allocation0 [shape = 'u32[]', space=smem, size = 0x4, offset = 0x4, fixed_abs, tag = 'smem constant byte address 0x4 - core index']
  #allocation1 [shape = 'u32[72,128]{1,0:T(1,128)}', space=vmem, size = 0x9000, scoped, tag = 'internal scratch']
  %s0 = inlined_call_operand.vmem [shape: f32[2,16,128], index: 0, kind: input, shape index: {}]
  %s1 = inlined_call_operand.vmem [shape: f32[2,16,128], index: 1, kind: input, shape index: {}]
  %s2 = inlined_call_operand.vmem [shape: f32[2,1,16], index: 2, kind: input, shape index: {}]
  %s3 = inlined_call_operand.vmem [shape: f32[2,16,1], index: 3, kind: input, shape index: {}]
  %s4 = inlined_call_operand.vmem [shape: bf16[512,128], index: 4, kind: input, shape index: {}]
  %s5 = inlined_call_operand.vmem [shape: f32[1,128], index: 5, kind: input, shape index: {}]
  %s6 = inlined_call_operand.vmem [shape: bf16[512,128], index: 6, kind: input, shape index: {}]
  %s7 = inlined_call_operand.vmem [shape: f32[1,128], index: 7, kind: input, shape index: {}]
  %s8 = inlined_call_operand.vmem [shape: bf16[128,128], index: 8, kind: input, shape index: {}]
  %s9 = inlined_call_operand.vmem [shape: f32[1,128], index: 9, kind: input, shape index: {}]
  %s10 = inlined_call_operand.vmem [shape: bf16[128,128], index: 10, kind: input, shape index: {}]
  %s11 = inlined_call_operand.vmem [shape: f32[1,128], index: 11, kind: input, shape index: {}]
  %s12 = inlined_call_operand.vmem [shape: bf16[128,128], index: 12, kind: input, shape index: {}]
  %s13 = inlined_call_operand.vmem [shape: f32[1,128], index: 13, kind: input, shape index: {}]
  %s14 = inlined_call_operand.vmem [shape: bf16[128,128], index: 14, kind: input, shape index: {}]
  %s15 = inlined_call_operand.vmem [shape: f32[1,128], index: 15, kind: input, shape index: {}]
  %s16 = inlined_call_operand.hbm [shape: f32[2,1,128], index: 16, kind: output, shape index: {0}]
  %s17 = inlined_call_operand.hbm [shape: f32[2,1,128], index: 17, kind: output, shape index: {1}]
  %18 = xla_tuple %s16, %s17
  %s19 = sld [smem:[#allocation0]]
  $region105: #{pair_supcon_forward.1} parent=0
    _
  %s21 = ssub.s32 1, %s19
  %s22 = scalar_select 0, %s21, %s19
  $region1: #{pair_supcon_forward.1} parent=0
    #allocation2 [shape = 'u8[1024]{0}', space=vmem, size = 0x400, scoped, tag = 'output window, operand 0']
    #allocation3 [shape = 's32[2]{0}', space=sflag, size = 0x8, scoped, tag = 'scoped memory for pair_supcon_forward.1']
    #allocation4 [shape = 'u8[1024]{0}', space=vmem, size = 0x400, scoped, tag = 'output window, operand 1']
    #allocation5 [shape = 's32[2]{0}', space=sflag, size = 0x8, scoped, tag = 'scoped memory for pair_supcon_forward.1']
    %23 = vsyncpa [#allocation3], 0
    %s24 = scalar_lea.sflag [#allocation3], 1
    %25 = vsyncpa %s24, 0
    %26 = vsyncpa [#allocation5], 0
    %s27 = scalar_lea.sflag [#allocation5], 1
    %28 = vsyncpa %s27, 0
    loop: start=0, step=1, limit=4
    $region2: #{pair_supcon_forward.1} parent=1 // loop_pre_header
      _
    $region3: #{pair_supcon_forward.1} parent=1 // loop_header
      %s30 = sphi 0, %s34
      %p31 = scmp.ge.s32.totalorder %s30, 4
      %s40 = sphi 0, %s42
      %s43 = sphi 0, %s40
      %s44 = sphi 0, %s43
      %s60 = sphi 0, %s44
      %s66 = sphi 0, %s68
      %s69 = sphi 0, %s66
      %s70 = sphi 0, %s69
      %s86 = sphi 0, %s70
      %s92 = sphi 0, %s94
      %s95 = sphi 0, %s92
      %s96 = sphi 0, %s95
      %s112 = sphi 0, %s96
      %s118 = sphi 0, %s120
      %s121 = sphi 0, %s118
      %s122 = sphi 0, %s121
      %s138 = sphi 0, %s122
      %s142 = sphi 0, %s142
      %s144 = sphi 0, %s142
      %s145 = sphi 0, %s144
      %s159 = sphi 0, %s145
      %s163 = sphi 0, %s163
      %s165 = sphi 0, %s163
      %s166 = sphi 0, %s165
      %s180 = sphi 0, %s166
      %s184 = sphi 0, %s184
      %s186 = sphi 0, %s184
      %s187 = sphi 0, %s186
      %s201 = sphi 0, %s187
      %s205 = sphi 0, %s205
      %s207 = sphi 0, %s205
      %s208 = sphi 0, %s207
      %s222 = sphi 0, %s208
      %s226 = sphi 0, %s226
      %s228 = sphi 0, %s226
      %s229 = sphi 0, %s228
      %s243 = sphi 0, %s229
      %s247 = sphi 0, %s247
      %s249 = sphi 0, %s247
      %s250 = sphi 0, %s249
      %s264 = sphi 0, %s250
      %s268 = sphi 0, %s268
      %s270 = sphi 0, %s268
      %s271 = sphi 0, %s270
      %s285 = sphi 0, %s271
      %s289 = sphi 0, %s289
      %s291 = sphi 0, %s289
      %s292 = sphi 0, %s291
      %s306 = sphi 0, %s292
      %s310 = sphi 0, %s310
      %s312 = sphi 0, %s310
      %s313 = sphi 0, %s312
      %s327 = sphi 0, %s313
      %s331 = sphi 0, %s331
      %s333 = sphi 0, %s331
      %s334 = sphi 0, %s333
      %s348 = sphi 0, %s334
      %s352 = sphi 0, %s352
      %s354 = sphi 0, %s352
      %s355 = sphi 0, %s354
      %s369 = sphi 0, %s355
      %s373 = sphi 0, %s373
      %s375 = sphi 0, %s373
      %s376 = sphi 0, %s375
      %s390 = sphi 0, %s376
      %s396 = sphi 0, %s398
      %s399 = sphi 0, %s396
      %s400 = sphi 0, %s399
      %s416 = sphi 0, %s400
      %s422 = sphi 0, %s424
      %s425 = sphi 0, %s422
      %s426 = sphi 0, %s425
      %s442 = sphi 0, %s426
    $region4: #{pair_supcon_forward.1} parent=1 // loop_header_branch
      %33 = sbr.rel (%p31) target = $region8
    $region5: #{pair_supcon_forward.1} parent=1 // loop_body
      %s35 = ssub.s32 %s30, 1
      %s36 = ssub.s32 %s30, 2
      %s37 = sadd.s32 %s30, 1
      %s38 = ssub.s32 %s30, %s37
      %p39 = scmp.eq.s32.totalorder %s38, 0
      %s41 = sadd.s32 %s40, 1
      %s42 = scalar_select %p39, %s40, %s41
      %p45 = pneg %p39
      %p46 = scmp.eq.s32.totalorder %s30, 1
      %p47 = por %p45, %p46
      %p48 = scmp.ne.s32.totalorder %s40, %s43
      %p49 = scmp.eq.s32.totalorder %s30, 0
      %p50 = por %p48, %p49
      %p51 = scmp.ne.s32.totalorder %s40, %s43
      %p52 = scmp.eq.s32.totalorder %s35, 1
      %p53 = por %p51, %p52
      %p54 = scmp.ne.s32.totalorder %s43, %s44
      %p55 = scmp.eq.s32.totalorder %s35, 0
      %p56 = por %p54, %p55
      %p57 = scmp.ne.s32.totalorder %s43, %s44
      %p58 = scmp.eq.s32.totalorder %s36, 1
      %p59 = por %p57, %p58
      %p61 = scmp.ne.s32.totalorder %s44, %s60
      %p62 = scmp.eq.s32.totalorder %s36, 0
      %p63 = por %p61, %p62
      %s64 = ssub.s32 %s30, %s37
      %p65 = scmp.eq.s32.totalorder %s64, 0
      %s67 = sadd.s32 %s66, 1
      %s68 = scalar_select %p65, %s66, %s67
      %p71 = pneg %p65
      %p72 = scmp.eq.s32.totalorder %s30, 1
      %p73 = por %p71, %p72
      %p74 = scmp.ne.s32.totalorder %s66, %s69
      %p75 = scmp.eq.s32.totalorder %s30, 0
      %p76 = por %p74, %p75
      %p77 = scmp.ne.s32.totalorder %s66, %s69
      %p78 = scmp.eq.s32.totalorder %s35, 1
      %p79 = por %p77, %p78
      %p80 = scmp.ne.s32.totalorder %s69, %s70
      %p81 = scmp.eq.s32.totalorder %s35, 0
      %p82 = por %p80, %p81
      %p83 = scmp.ne.s32.totalorder %s69, %s70
      %p84 = scmp.eq.s32.totalorder %s36, 1
      %p85 = por %p83, %p84
      %p87 = scmp.ne.s32.totalorder %s70, %s86
      %p88 = scmp.eq.s32.totalorder %s36, 0
      %p89 = por %p87, %p88
      %s90 = ssub.s32 %s30, %s37
      %p91 = scmp.eq.s32.totalorder %s90, 0
      %s93 = sadd.s32 %s92, 1
      %s94 = scalar_select %p91, %s92, %s93
      %p97 = pneg %p91
      %p98 = scmp.eq.s32.totalorder %s30, 1
      %p99 = por %p97, %p98
      %p100 = scmp.ne.s32.totalorder %s92, %s95
      %p101 = scmp.eq.s32.totalorder %s30, 0
      %p102 = por %p100, %p101
      %p103 = scmp.ne.s32.totalorder %s92, %s95
      %p104 = scmp.eq.s32.totalorder %s35, 1
      %p105 = por %p103, %p104
      %p106 = scmp.ne.s32.totalorder %s95, %s96
      %p107 = scmp.eq.s32.totalorder %s35, 0
      %p108 = por %p106, %p107
      %p109 = scmp.ne.s32.totalorder %s95, %s96
      %p110 = scmp.eq.s32.totalorder %s36, 1
      %p111 = por %p109, %p110
      %p113 = scmp.ne.s32.totalorder %s96, %s112
      %p114 = scmp.eq.s32.totalorder %s36, 0
      %p115 = por %p113, %p114
      %s116 = ssub.s32 %s30, %s37
      %p117 = scmp.eq.s32.totalorder %s116, 0
      %s119 = sadd.s32 %s118, 1
      %s120 = scalar_select %p117, %s118, %s119
      %p123 = pneg %p117
      %p124 = scmp.eq.s32.totalorder %s30, 1
      %p125 = por %p123, %p124
      %p126 = scmp.ne.s32.totalorder %s118, %s121
      %p127 = scmp.eq.s32.totalorder %s30, 0
      %p128 = por %p126, %p127
      %p129 = scmp.ne.s32.totalorder %s118, %s121
      %p130 = scmp.eq.s32.totalorder %s35, 1
      %p131 = por %p129, %p130
      %p132 = scmp.ne.s32.totalorder %s121, %s122
      %p133 = scmp.eq.s32.totalorder %s35, 0
      %p134 = por %p132, %p133
      %p135 = scmp.ne.s32.totalorder %s121, %s122
      %p136 = scmp.eq.s32.totalorder %s36, 1
      %p137 = por %p135, %p136
      %p139 = scmp.ne.s32.totalorder %s122, %s138
      %p140 = scmp.eq.s32.totalorder %s36, 0
      %p141 = por %p139, %p140
      %s143 = sadd.s32 %s142, 1
      %p146 = scmp.eq.s32.totalorder %s30, 1
      %p147 = scmp.ne.s32.totalorder %s142, %s144
      %p148 = scmp.eq.s32.totalorder %s30, 0
      %p149 = por %p147, %p148
      %p150 = scmp.ne.s32.totalorder %s142, %s144
      %p151 = scmp.eq.s32.totalorder %s35, 1
      %p152 = por %p150, %p151
      %p153 = scmp.ne.s32.totalorder %s144, %s145
      %p154 = scmp.eq.s32.totalorder %s35, 0
      %p155 = por %p153, %p154
      %p156 = scmp.ne.s32.totalorder %s144, %s145
      %p157 = scmp.eq.s32.totalorder %s36, 1
      %p158 = por %p156, %p157
      %p160 = scmp.ne.s32.totalorder %s145, %s159
      %p161 = scmp.eq.s32.totalorder %s36, 0
      %p162 = por %p160, %p161
      %s164 = sadd.s32 %s163, 1
      %p167 = scmp.eq.s32.totalorder %s30, 1
      %p168 = scmp.ne.s32.totalorder %s163, %s165
      %p169 = scmp.eq.s32.totalorder %s30, 0
      %p170 = por %p168, %p169
      %p171 = scmp.ne.s32.totalorder %s163, %s165
      %p172 = scmp.eq.s32.totalorder %s35, 1
      %p173 = por %p171, %p172
      %p174 = scmp.ne.s32.totalorder %s165, %s166
      %p175 = scmp.eq.s32.totalorder %s35, 0
      %p176 = por %p174, %p175
      %p177 = scmp.ne.s32.totalorder %s165, %s166
      %p178 = scmp.eq.s32.totalorder %s36, 1
      %p179 = por %p177, %p178
      %p181 = scmp.ne.s32.totalorder %s166, %s180
      %p182 = scmp.eq.s32.totalorder %s36, 0
      %p183 = por %p181, %p182
      %s185 = sadd.s32 %s184, 1
      %p188 = scmp.eq.s32.totalorder %s30, 1
      %p189 = scmp.ne.s32.totalorder %s184, %s186
      %p190 = scmp.eq.s32.totalorder %s30, 0
      %p191 = por %p189, %p190
      %p192 = scmp.ne.s32.totalorder %s184, %s186
      %p193 = scmp.eq.s32.totalorder %s35, 1
      %p194 = por %p192, %p193
      %p195 = scmp.ne.s32.totalorder %s186, %s187
      %p196 = scmp.eq.s32.totalorder %s35, 0
      %p197 = por %p195, %p196
      %p198 = scmp.ne.s32.totalorder %s186, %s187
      %p199 = scmp.eq.s32.totalorder %s36, 1
      %p200 = por %p198, %p199
      %p202 = scmp.ne.s32.totalorder %s187, %s201
      %p203 = scmp.eq.s32.totalorder %s36, 0
      %p204 = por %p202, %p203
      %s206 = sadd.s32 %s205, 1
      %p209 = scmp.eq.s32.totalorder %s30, 1
      %p210 = scmp.ne.s32.totalorder %s205, %s207
      %p211 = scmp.eq.s32.totalorder %s30, 0
      %p212 = por %p210, %p211
      %p213 = scmp.ne.s32.totalorder %s205, %s207
      %p214 = scmp.eq.s32.totalorder %s35, 1
      %p215 = por %p213, %p214
      %p216 = scmp.ne.s32.totalorder %s207, %s208
      %p217 = scmp.eq.s32.totalorder %s35, 0
      %p218 = por %p216, %p217
      %p219 = scmp.ne.s32.totalorder %s207, %s208
      %p220 = scmp.eq.s32.totalorder %s36, 1
      %p221 = por %p219, %p220
      %p223 = scmp.ne.s32.totalorder %s208, %s222
      %p224 = scmp.eq.s32.totalorder %s36, 0
      %p225 = por %p223, %p224
      %s227 = sadd.s32 %s226, 1
      %p230 = scmp.eq.s32.totalorder %s30, 1
      %p231 = scmp.ne.s32.totalorder %s226, %s228
      %p232 = scmp.eq.s32.totalorder %s30, 0
      %p233 = por %p231, %p232
      %p234 = scmp.ne.s32.totalorder %s226, %s228
      %p235 = scmp.eq.s32.totalorder %s35, 1
      %p236 = por %p234, %p235
      %p237 = scmp.ne.s32.totalorder %s228, %s229
      %p238 = scmp.eq.s32.totalorder %s35, 0
      %p239 = por %p237, %p238
      %p240 = scmp.ne.s32.totalorder %s228, %s229
      %p241 = scmp.eq.s32.totalorder %s36, 1
      %p242 = por %p240, %p241
      %p244 = scmp.ne.s32.totalorder %s229, %s243
      %p245 = scmp.eq.s32.totalorder %s36, 0
      %p246 = por %p244, %p245
      %s248 = sadd.s32 %s247, 1
      %p251 = scmp.eq.s32.totalorder %s30, 1
      %p252 = scmp.ne.s32.totalorder %s247, %s249
      %p253 = scmp.eq.s32.totalorder %s30, 0
      %p254 = por %p252, %p253
      %p255 = scmp.ne.s32.totalorder %s247, %s249
      %p256 = scmp.eq.s32.totalorder %s35, 1
      %p257 = por %p255, %p256
      %p258 = scmp.ne.s32.totalorder %s249, %s250
      %p259 = scmp.eq.s32.totalorder %s35, 0
      %p260 = por %p258, %p259
      %p261 = scmp.ne.s32.totalorder %s249, %s250
      %p262 = scmp.eq.s32.totalorder %s36, 1
      %p263 = por %p261, %p262
      %p265 = scmp.ne.s32.totalorder %s250, %s264
      %p266 = scmp.eq.s32.totalorder %s36, 0
      %p267 = por %p265, %p266
      %s269 = sadd.s32 %s268, 1
      %p272 = scmp.eq.s32.totalorder %s30, 1
      %p273 = scmp.ne.s32.totalorder %s268, %s270
      %p274 = scmp.eq.s32.totalorder %s30, 0
      %p275 = por %p273, %p274
      %p276 = scmp.ne.s32.totalorder %s268, %s270
      %p277 = scmp.eq.s32.totalorder %s35, 1
      %p278 = por %p276, %p277
      %p279 = scmp.ne.s32.totalorder %s270, %s271
      %p280 = scmp.eq.s32.totalorder %s35, 0
      %p281 = por %p279, %p280
      %p282 = scmp.ne.s32.totalorder %s270, %s271
      %p283 = scmp.eq.s32.totalorder %s36, 1
      %p284 = por %p282, %p283
      %p286 = scmp.ne.s32.totalorder %s271, %s285
      %p287 = scmp.eq.s32.totalorder %s36, 0
      %p288 = por %p286, %p287
      %s290 = sadd.s32 %s289, 1
      %p293 = scmp.eq.s32.totalorder %s30, 1
      %p294 = scmp.ne.s32.totalorder %s289, %s291
      %p295 = scmp.eq.s32.totalorder %s30, 0
      %p296 = por %p294, %p295
      %p297 = scmp.ne.s32.totalorder %s289, %s291
      %p298 = scmp.eq.s32.totalorder %s35, 1
      %p299 = por %p297, %p298
      %p300 = scmp.ne.s32.totalorder %s291, %s292
      %p301 = scmp.eq.s32.totalorder %s35, 0
      %p302 = por %p300, %p301
      %p303 = scmp.ne.s32.totalorder %s291, %s292
      %p304 = scmp.eq.s32.totalorder %s36, 1
      %p305 = por %p303, %p304
      %p307 = scmp.ne.s32.totalorder %s292, %s306
      %p308 = scmp.eq.s32.totalorder %s36, 0
      %p309 = por %p307, %p308
      %s311 = sadd.s32 %s310, 1
      %p314 = scmp.eq.s32.totalorder %s30, 1
      %p315 = scmp.ne.s32.totalorder %s310, %s312
      %p316 = scmp.eq.s32.totalorder %s30, 0
      %p317 = por %p315, %p316
      %p318 = scmp.ne.s32.totalorder %s310, %s312
      %p319 = scmp.eq.s32.totalorder %s35, 1
      %p320 = por %p318, %p319
      %p321 = scmp.ne.s32.totalorder %s312, %s313
      %p322 = scmp.eq.s32.totalorder %s35, 0
      %p323 = por %p321, %p322
      %p324 = scmp.ne.s32.totalorder %s312, %s313
      %p325 = scmp.eq.s32.totalorder %s36, 1
      %p326 = por %p324, %p325
      %p328 = scmp.ne.s32.totalorder %s313, %s327
      %p329 = scmp.eq.s32.totalorder %s36, 0
      %p330 = por %p328, %p329
      %s332 = sadd.s32 %s331, 1
      %p335 = scmp.eq.s32.totalorder %s30, 1
      %p336 = scmp.ne.s32.totalorder %s331, %s333
      %p337 = scmp.eq.s32.totalorder %s30, 0
      %p338 = por %p336, %p337
      %p339 = scmp.ne.s32.totalorder %s331, %s333
      %p340 = scmp.eq.s32.totalorder %s35, 1
      %p341 = por %p339, %p340
      %p342 = scmp.ne.s32.totalorder %s333, %s334
      %p343 = scmp.eq.s32.totalorder %s35, 0
      %p344 = por %p342, %p343
      %p345 = scmp.ne.s32.totalorder %s333, %s334
      %p346 = scmp.eq.s32.totalorder %s36, 1
      %p347 = por %p345, %p346
      %p349 = scmp.ne.s32.totalorder %s334, %s348
      %p350 = scmp.eq.s32.totalorder %s36, 0
      %p351 = por %p349, %p350
      %s353 = sadd.s32 %s352, 1
      %p356 = scmp.eq.s32.totalorder %s30, 1
      %p357 = scmp.ne.s32.totalorder %s352, %s354
      %p358 = scmp.eq.s32.totalorder %s30, 0
      %p359 = por %p357, %p358
      %p360 = scmp.ne.s32.totalorder %s352, %s354
      %p361 = scmp.eq.s32.totalorder %s35, 1
      %p362 = por %p360, %p361
      %p363 = scmp.ne.s32.totalorder %s354, %s355
      %p364 = scmp.eq.s32.totalorder %s35, 0
      %p365 = por %p363, %p364
      %p366 = scmp.ne.s32.totalorder %s354, %s355
      %p367 = scmp.eq.s32.totalorder %s36, 1
      %p368 = por %p366, %p367
      %p370 = scmp.ne.s32.totalorder %s355, %s369
      %p371 = scmp.eq.s32.totalorder %s36, 0
      %p372 = por %p370, %p371
      %s374 = sadd.s32 %s373, 1
      %p377 = scmp.eq.s32.totalorder %s30, 1
      %p378 = scmp.ne.s32.totalorder %s373, %s375
      %p379 = scmp.eq.s32.totalorder %s30, 0
      %p380 = por %p378, %p379
      %p381 = scmp.ne.s32.totalorder %s373, %s375
      %p382 = scmp.eq.s32.totalorder %s35, 1
      %p383 = por %p381, %p382
      %p384 = scmp.ne.s32.totalorder %s375, %s376
      %p385 = scmp.eq.s32.totalorder %s35, 0
      %p386 = por %p384, %p385
      %p387 = scmp.ne.s32.totalorder %s375, %s376
      %p388 = scmp.eq.s32.totalorder %s36, 1
      %p389 = por %p387, %p388
      %p391 = scmp.ne.s32.totalorder %s376, %s390
      %p392 = scmp.eq.s32.totalorder %s36, 0
      %p393 = por %p391, %p392
      %s394 = ssub.s32 %s30, %s37
      %p395 = scmp.eq.s32.totalorder %s394, 0
      %s397 = sadd.s32 %s396, 1
      %s398 = scalar_select %p395, %s396, %s397
      %p401 = pneg %p395
      %p402 = scmp.eq.s32.totalorder %s30, 1
      %p403 = por %p401, %p402
      %p404 = scmp.ne.s32.totalorder %s396, %s399
      %p405 = scmp.eq.s32.totalorder %s30, 0
      %p406 = por %p404, %p405
      %p407 = scmp.ne.s32.totalorder %s396, %s399
      %p408 = scmp.eq.s32.totalorder %s35, 1
      %p409 = por %p407, %p408
      %p410 = scmp.ne.s32.totalorder %s399, %s400
      %p411 = scmp.eq.s32.totalorder %s35, 0
      %p412 = por %p410, %p411
      %p413 = scmp.ne.s32.totalorder %s399, %s400
      %p414 = scmp.eq.s32.totalorder %s36, 1
      %p415 = por %p413, %p414
      %p417 = scmp.ne.s32.totalorder %s400, %s416
      %p418 = scmp.eq.s32.totalorder %s36, 0
      %p419 = por %p417, %p418
      %s420 = ssub.s32 %s30, %s37
      %p421 = scmp.eq.s32.totalorder %s420, 0
      %s423 = sadd.s32 %s422, 1
      %s424 = scalar_select %p421, %s422, %s423
      %p427 = pneg %p421
      %p428 = scmp.eq.s32.totalorder %s30, 1
      %p429 = por %p427, %p428
      %p430 = scmp.ne.s32.totalorder %s422, %s425
      %p431 = scmp.eq.s32.totalorder %s30, 0
      %p432 = por %p430, %p431
      %p433 = scmp.ne.s32.totalorder %s422, %s425
      %p434 = scmp.eq.s32.totalorder %s35, 1
      %p435 = por %p433, %p434
      %p436 = scmp.ne.s32.totalorder %s425, %s426
      %p437 = scmp.eq.s32.totalorder %s35, 0
      %p438 = por %p436, %p437
      %p439 = scmp.ne.s32.totalorder %s425, %s426
      %p440 = scmp.eq.s32.totalorder %s36, 1
      %p441 = por %p439, %p440
      %p443 = scmp.ne.s32.totalorder %s426, %s442
      %p444 = scmp.eq.s32.totalorder %s36, 0
      %p445 = por %p443, %p444
      %p446 = scmp.le.s32.totalorder 1, %s30
      %p447 = scmp.lt.s32.totalorder %s30, 3
      %p448 = pnand %p446, %p447
      %p449 = pneg %p448
      // Predicated region
      $region9: #{pair_supcon_forward.1} parent=5 // pred_check
        _
      $region10: #{pair_supcon_forward.1} parent=5 // pred_check_branch
        %451 = sbr.rel (%p448) target = $region12
      $region11: #{pair_supcon_forward.1} parent=5 // pred_region
        %s452 = ssub.s32 %s30, 1
        // Predicated region
        $region13: #{pair_supcon_forward.1} parent=11 // pred_check
          %p453 = pneg %p155
        $region14: #{pair_supcon_forward.1} parent=11 // pred_check_branch
          %455 = sbr.rel (%p453) target = $region16
        $region15: #{pair_supcon_forward.1} parent=11 // pred_region
          _
        $region16: #{pair_supcon_forward.1} parent=11 // pred_fallthru
          _
        // Predicated region
        $region17: #{pair_supcon_forward.1} parent=11 // pred_check
          %p456 = pneg %p176
        $region18: #{pair_supcon_forward.1} parent=11 // pred_check_branch
          %458 = sbr.rel (%p456) target = $region20
        $region19: #{pair_supcon_forward.1} parent=11 // pred_region
          _
        $region20: #{pair_supcon_forward.1} parent=11 // pred_fallthru
          _
        // Predicated region
        $region21: #{pair_supcon_forward.1} parent=11 // pred_check
          %p459 = pneg %p197
        $region22: #{pair_supcon_forward.1} parent=11 // pred_check_branch
          %461 = sbr.rel (%p459) target = $region24
        $region23: #{pair_supcon_forward.1} parent=11 // pred_region
          _
        $region24: #{pair_supcon_forward.1} parent=11 // pred_fallthru
          _
        // Predicated region
        $region25: #{pair_supcon_forward.1} parent=11 // pred_check
          %p462 = pneg %p218
        $region26: #{pair_supcon_forward.1} parent=11 // pred_check_branch
          %464 = sbr.rel (%p462) target = $region28
        $region27: #{pair_supcon_forward.1} parent=11 // pred_region
          _
        $region28: #{pair_supcon_forward.1} parent=11 // pred_fallthru
          _
        // Predicated region
        $region29: #{pair_supcon_forward.1} parent=11 // pred_check
          %p465 = pneg %p239
        $region30: #{pair_supcon_forward.1} parent=11 // pred_check_branch
          %467 = sbr.rel (%p465) target = $region32
        $region31: #{pair_supcon_forward.1} parent=11 // pred_region
          _
        $region32: #{pair_supcon_forward.1} parent=11 // pred_fallthru
          _
        // Predicated region
        $region33: #{pair_supcon_forward.1} parent=11 // pred_check
          %p468 = pneg %p260
        $region34: #{pair_supcon_forward.1} parent=11 // pred_check_branch
          %470 = sbr.rel (%p468) target = $region36
        $region35: #{pair_supcon_forward.1} parent=11 // pred_region
          _
        $region36: #{pair_supcon_forward.1} parent=11 // pred_fallthru
          _
        // Predicated region
        $region37: #{pair_supcon_forward.1} parent=11 // pred_check
          %p471 = pneg %p281
        $region38: #{pair_supcon_forward.1} parent=11 // pred_check_branch
          %473 = sbr.rel (%p471) target = $region40
        $region39: #{pair_supcon_forward.1} parent=11 // pred_region
          _
        $region40: #{pair_supcon_forward.1} parent=11 // pred_fallthru
          _
        // Predicated region
        $region41: #{pair_supcon_forward.1} parent=11 // pred_check
          %p474 = pneg %p302
        $region42: #{pair_supcon_forward.1} parent=11 // pred_check_branch
          %476 = sbr.rel (%p474) target = $region44
        $region43: #{pair_supcon_forward.1} parent=11 // pred_region
          _
        $region44: #{pair_supcon_forward.1} parent=11 // pred_fallthru
          _
        // Predicated region
        $region45: #{pair_supcon_forward.1} parent=11 // pred_check
          %p477 = pneg %p323
        $region46: #{pair_supcon_forward.1} parent=11 // pred_check_branch
          %479 = sbr.rel (%p477) target = $region48
        $region47: #{pair_supcon_forward.1} parent=11 // pred_region
          _
        $region48: #{pair_supcon_forward.1} parent=11 // pred_fallthru
          _
        // Predicated region
        $region49: #{pair_supcon_forward.1} parent=11 // pred_check
          %p480 = pneg %p344
        $region50: #{pair_supcon_forward.1} parent=11 // pred_check_branch
          %482 = sbr.rel (%p480) target = $region52
        $region51: #{pair_supcon_forward.1} parent=11 // pred_region
          _
        $region52: #{pair_supcon_forward.1} parent=11 // pred_fallthru
          _
        // Predicated region
        $region53: #{pair_supcon_forward.1} parent=11 // pred_check
          %p483 = pneg %p365
        $region54: #{pair_supcon_forward.1} parent=11 // pred_check_branch
          %485 = sbr.rel (%p483) target = $region56
        $region55: #{pair_supcon_forward.1} parent=11 // pred_region
          _
        $region56: #{pair_supcon_forward.1} parent=11 // pred_fallthru
          _
        // Predicated region
        $region57: #{pair_supcon_forward.1} parent=11 // pred_check
          %p486 = pneg %p386
        $region58: #{pair_supcon_forward.1} parent=11 // pred_check_branch
          %488 = sbr.rel (%p486) target = $region60
        $region59: #{pair_supcon_forward.1} parent=11 // pred_region
          _
        $region60: #{pair_supcon_forward.1} parent=11 // pred_fallthru
          _
      $region12: #{pair_supcon_forward.1} parent=5 // pred_fallthru
        _
      %p489 = scmp.lt.s32.totalorder %s30, 2
      // Predicated region
      $region61: #{pair_supcon_forward.1} parent=5 // pred_check
        %p490 = pneg %p489
      $region62: #{pair_supcon_forward.1} parent=5 // pred_check_branch
        %492 = sbr.rel (%p490) target = $region64
      $region63: #{pair_supcon_forward.1} parent=5 // pred_region
        // Predicated region
        $region65: #{pair_supcon_forward.1} parent=63 // pred_check
          %p493 = pneg %p50
        $region66: #{pair_supcon_forward.1} parent=63 // pred_check_branch
          %495 = sbr.rel (%p493) target = $region68
        $region67: #{pair_supcon_forward.1} parent=63 // pred_region
          %p496 = scmp.lt.s32.totalorder %s30, 1
          %s497 = scalar_select %p496, %s30, 1
          %s498 = smul.addr %s497, 2
          %s499 = smul.addr %s498, 8
          %s500 = scalar_lea.vmem %s0, %s499
        $region68: #{pair_supcon_forward.1} parent=63 // pred_fallthru
          _
        // Predicated region
        $region69: #{pair_supcon_forward.1} parent=63 // pred_check
          %p501 = pneg %p76
        $region70: #{pair_supcon_forward.1} parent=63 // pred_check_branch
          %503 = sbr.rel (%p501) target = $region72
        $region71: #{pair_supcon_forward.1} parent=63 // pred_region
          %p504 = scmp.lt.s32.totalorder %s30, 1
          %s505 = scalar_select %p504, %s30, 1
          %s506 = smul.addr %s505, 2
          %s507 = smul.addr %s506, 8
          %s508 = scalar_lea.vmem %s1, %s507
        $region72: #{pair_supcon_forward.1} parent=63 // pred_fallthru
          _
        // Predicated region
        $region73: #{pair_supcon_forward.1} parent=63 // pred_check
          %p509 = pneg %p102
        $region74: #{pair_supcon_forward.1} parent=63 // pred_check_branch
          %511 = sbr.rel (%p509) target = $region76
        $region75: #{pair_supcon_forward.1} parent=63 // pred_region
          %p512 = scmp.lt.s32.totalorder %s30, 1
          %s513 = scalar_select %p512, %s30, 1
          %s514 = scalar_lea.vmem %s2, %s513
        $region76: #{pair_supcon_forward.1} parent=63 // pred_fallthru
          _
        // Predicated region
        $region77: #{pair_supcon_forward.1} parent=63 // pred_check
          %p515 = pneg %p128
        $region78: #{pair_supcon_forward.1} parent=63 // pred_check_branch
          %517 = sbr.rel (%p515) target = $region80
        $region79: #{pair_supcon_forward.1} parent=63 // pred_region
          %p518 = scmp.lt.s32.totalorder %s30, 1
          %s519 = scalar_select %p518, %s30, 1
          %s520 = smul.addr %s519, 2
          %s521 = smul.addr %s520, 8
          %s522 = scalar_lea.vmem %s3, %s521
        $region80: #{pair_supcon_forward.1} parent=63 // pred_fallthru
          _
      $region64: #{pair_supcon_forward.1} parent=5 // pred_fallthru
        _
      %p523 = scmp.le.s32.totalorder 1, %s30
      %p524 = scmp.lt.s32.totalorder %s30, 3
      %p525 = pnand %p523, %p524
      %p526 = pneg %p525
      // Predicated region
      $region81: #{pair_supcon_forward.1} parent=5 // pred_check
        _
      $region82: #{pair_supcon_forward.1} parent=5 // pred_check_branch
        %528 = sbr.rel (%p525) target = $region84
      $region83: #{pair_supcon_forward.1} parent=5 // pred_region
        %s529 = ssub.s32 %s30, 1
        %p530 = scmp.lt.s32.totalorder %s35, 1
        %s531 = scalar_select %p530, %s35, 1
        %s532 = smul.addr %s531, 2
        %s533 = smul.addr %s532, 8
        %s534 = scalar_lea.vmem %s0, %s533
        %p535 = pneg %p56
        %p536 = pneg %p53
        %p537 = scmp.lt.s32.totalorder %s35, 1
        %s538 = scalar_select %p537, %s35, 1
        %s539 = smul.addr %s538, 2
        %s540 = smul.addr %s539, 8
        %s541 = scalar_lea.vmem %s1, %s540
        %p542 = pneg %p82
        %p543 = pneg %p79
        %p544 = scmp.lt.s32.totalorder %s35, 1
        %s545 = scalar_select %p544, %s35, 1
        %s546 = scalar_lea.vmem %s2, %s545
        %p547 = pneg %p108
        %p548 = pneg %p105
        %p549 = scmp.lt.s32.totalorder %s35, 1
        %s550 = scalar_select %p549, %s35, 1
        %s551 = smul.addr %s550, 2
        %s552 = smul.addr %s551, 8
        %s553 = scalar_lea.vmem %s3, %s552
        %p554 = pneg %p134
        %p555 = pneg %p131
        %p556 = pneg %p155
        %p557 = pneg %p152
        %p558 = pneg %p176
        %p559 = pneg %p173
        %p560 = pneg %p197
        %p561 = pneg %p194
        %p562 = pneg %p218
        %p563 = pneg %p215
        %p564 = pneg %p239
        %p565 = pneg %p236
        %p566 = pneg %p260
        %p567 = pneg %p257
        %p568 = pneg %p281
        %p569 = pneg %p278
        %p570 = pneg %p302
        %p571 = pneg %p299
        %p572 = pneg %p323
        %p573 = pneg %p320
        %p574 = pneg %p344
        %p575 = pneg %p341
        %p576 = pneg %p365
        %p577 = pneg %p362
        %p578 = pneg %p386
        %p579 = pneg %p383
        %p580 = pneg %p412
        %p581 = pneg %p409
        %s582 = sand.u32 %s399, 1
        %s583 = scalar_lea.sflag [#allocation3], %s582
        %s584 = sand.u32 %s399, 1
        %s585 = scalar_lea.vmem [#allocation2], %s584
        %p586 = pneg %p438
        %p587 = pneg %p435
        %s588 = sand.u32 %s425, 1
        %s589 = scalar_lea.sflag [#allocation5], %s588
        %s590 = sand.u32 %s425, 1
        %s591 = scalar_lea.vmem [#allocation4], %s590
        %p592 = scmp.lt.s32.totalorder %s35, 1
        %s593 = scalar_select %p592, %s35, 1
        %s594 = smul.addr %s593, 2
        %s595 = smul.addr %s594, 8
        %s596 = scalar_lea.vmem %s0, %s595
        %p597 = scmp.lt.s32.totalorder %s35, 1
        %s598 = scalar_select %p597, %s35, 1
        %s599 = smul.addr %s598, 2
        %s600 = smul.addr %s599, 8
        %s601 = scalar_lea.vmem %s1, %s600
        %p602 = scmp.lt.s32.totalorder %s35, 1
        %s603 = scalar_select %p602, %s35, 1
        %s604 = scalar_lea.vmem %s2, %s603
        %p605 = scmp.lt.s32.totalorder %s35, 1
        %s606 = scalar_select %p605, %s35, 1
        %s607 = smul.addr %s606, 2
        %s608 = smul.addr %s607, 8
        %s609 = scalar_lea.vmem %s3, %s608
        %v611 = vld [vmem:[%s596] sm:$0xff]
        %v612 = vld [vmem:[%s596 + $0x8] sm:$0xff]
        %v613 = vld [vmem:[%s601] sm:$0xff]
        %v614 = vld [vmem:[%s601 + $0x8] sm:$0xff]
        %v615 = vld [vmem:[%s604] sm:$0x1]
        %v616 = vld [vmem:[%s609] sm:$0xff]
        %v617 = vld [vmem:[%s609 + $0x8] sm:$0xff]
        %v618 = vpack.c.bf16 %v612, %v611
        %v619 = vpack.c.bf16 %v614, %v613
        %620 = vmatpush.bf16.xpose.msra.mxu0 0
        %621 = vmatpush.bf16.xpose.msra.mxu0 0
        %622 = vmatpush.bf16.xpose.msra.mxu0 0
        %623 = vmatpush.bf16.xpose.msra.mxu0 0
        %624 = vmatpush.bf16.xpose.msra.mxu0 0
        %625 = vmatpush.bf16.xpose.msra.mxu0 0
        %626 = vmatpush.bf16.xpose.msra.mxu0 0
        %627 = vmatpush.bf16.xpose.msra.mxu0 %v619
        %628 = vmatmul.bf16.gmra.mxu0 %v618
        %v629 = vpop.f32.mrf.mxu0
        %v630 = vadd.f32 0.0, %v629
        %v631 = vpop.f32.mrf.mxu0
        %v632 = vadd.f32 0.0, %v631
        %633 = vdwg.mxu0
        %634 = vmatpush.bf16.xpose.msra.mxu0 0
        %635 = vmatpush.bf16.xpose.msra.mxu0 0
        %636 = vmatpush.bf16.xpose.msra.mxu0 0
        %637 = vmatpush.bf16.xpose.msra.mxu0 0
        %638 = vmatpush.bf16.xpose.msra.mxu0 0
        %639 = vmatpush.bf16.xpose.msra.mxu0 0
        %640 = vmatpush.bf16.xpose.msra.mxu0 0
        %641 = vmatpush.bf16.xpose.msra.mxu0 %v618
        %642 = vmatmul.bf16.gmra.mxu0 %v619
        %v643 = vpop.f32.mrf.mxu0
        %v644 = vadd.f32 0.0, %v643
        %v645 = vpop.f32.mrf.mxu0
        %v646 = vadd.f32 0.0, %v645
        %647 = vdwg.mxu0
        %v649 = vperm.slane %v615, 0
        %v651 = vmul.f32 %v630, %v649
        %v652 = vmul.f32 %v632, %v649
        %vm653 = vcmask 130048
        %v654 = vsel %vm653, %v651, -inf
        %655 = vmax.xlane.f32.xlu0 %v654
        %v656 = vpop.xlane.xlu0 %655
        %v657 = vsel %vm653, %v652, -inf
        %658 = vmax.xlane.f32.xlu0 %v657
        %v659 = vpop.xlane.xlu0 %658
        %v660 = vsub.f32 %v651, %v656
        %v661 = vsub.f32 %v652, %v659
        %v662 = vmul.f32 %v660, 1.442695
        %v663 = vpow.pop %v662
        %v664 = vmul.f32 %v661, 1.442695
        %v665 = vpow.pop %v664
        %v666 = vsel %vm653, %v663, 0.0
        %667 = vadd.xlane.f32.xlu0 %v666
        %v668 = vpop.xlane.xlu0 %667
        %v669 = vsel %vm653, %v665, 0.0
        %670 = vadd.xlane.f32.xlu0 %v669
        %v671 = vpop.xlane.xlu0 %670
        %v672 = vrcp.pop %v668
        %v673 = vmul.f32 %v668, %v672
        %v674 = vsub.f32 1.0, %v673
        %v675 = vmul.f32 %v672, %v674
        %v676 = vadd.f32 %v672, %v675
        %vm677 = vweird.f32 %v668
        %vm678 = vweird.f32 %v672
        %vm679 = vmor %vm677, %vm678
        %v680 = vsel %vm679, %v672, %v676
        %v681 = vand.u32 2147483647, %v668
        %vm682 = vcmp.eq.f32.partialorder %v681, 8.507059e+37
        %v683 = vand.u32 %v668, 2147483648
        %v684 = vor.u32 1.1754944e-38, %v683
        %v685 = vsel %vm682, %v684, %v680
        %v686 = vmul.f32 %v663, %v685
        %v687 = vrcp.pop %v671
        %v688 = vmul.f32 %v671, %v687
        %v689 = vsub.f32 1.0, %v688
        %v690 = vmul.f32 %v687, %v689
        %v691 = vadd.f32 %v687, %v690
        %vm692 = vweird.f32 %v671
        %vm693 = vweird.f32 %v687
        %vm694 = vmor %vm692, %vm693
        %v695 = vsel %vm694, %v687, %v691
        %v696 = vand.u32 2147483647, %v671
        %vm697 = vcmp.eq.f32.partialorder %v696, 8.507059e+37
        %v698 = vand.u32 %v671, 2147483648
        %v699 = vor.u32 1.1754944e-38, %v698
        %v700 = vsel %vm697, %v699, %v695
        %v701 = vmul.f32 %v665, %v700
        %v702 = vmul.f32 %v686, %v649
        %v703 = vmul.f32 %v701, %v649
        %v704 = vsel %vm653, %v702, 0.0
        %705 = vadd.xlane.f32.xlu0 %v704
        %v706 = vpop.xlane.xlu0 %705
        %v707 = vsel %vm653, %v703, 0.0
        %708 = vadd.xlane.f32.xlu0 %v707
        %v709 = vpop.xlane.xlu0 %708
        %v710 = vadd.f32 %v706, 1e-13
        %v711 = vadd.f32 %v709, 1e-13
        %v712 = vrcp.pop %v710
        %v713 = vmul.f32 %v710, %v712
        %v714 = vsub.f32 1.0, %v713
        %v715 = vmul.f32 %v712, %v714
        %v716 = vadd.f32 %v712, %v715
        %vm717 = vweird.f32 %v710
        %vm718 = vweird.f32 %v712
        %vm719 = vmor %vm717, %vm718
        %v720 = vsel %vm719, %v712, %v716
        %v721 = vand.u32 2147483647, %v710
        %vm722 = vcmp.eq.f32.partialorder %v721, 8.507059e+37
        %v723 = vand.u32 %v710, 2147483648
        %v724 = vor.u32 1.1754944e-38, %v723
        %v725 = vsel %vm722, %v724, %v720
        %v726 = vmul.f32 %v702, %v725
        %v727 = vrcp.pop %v711
        %v728 = vmul.f32 %v711, %v727
        %v729 = vsub.f32 1.0, %v728
        %v730 = vmul.f32 %v727, %v729
        %v731 = vadd.f32 %v727, %v730
        %vm732 = vweird.f32 %v711
        %vm733 = vweird.f32 %v727
        %vm734 = vmor %vm732, %vm733
        %v735 = vsel %vm734, %v727, %v731
        %v736 = vand.u32 2147483647, %v711
        %vm737 = vcmp.eq.f32.partialorder %v736, 8.507059e+37
        %v738 = vand.u32 %v711, 2147483648
        %v739 = vor.u32 1.1754944e-38, %v738
        %v740 = vsel %vm737, %v739, %v735
        %v741 = vmul.f32 %v703, %v740
        %v742 = vmul.f32 %v644, %v649
        %v743 = vmul.f32 %v646, %v649
        %v744 = vsel %vm653, %v742, -inf
        %745 = vmax.xlane.f32.xlu0 %v744
        %v746 = vpop.xlane.xlu0 %745
        %v747 = vsel %vm653, %v743, -inf
        %748 = vmax.xlane.f32.xlu0 %v747
        %v749 = vpop.xlane.xlu0 %748
        %v750 = vsub.f32 %v742, %v746
        %v751 = vsub.f32 %v743, %v749
        %v752 = vmul.f32 %v750, 1.442695
        %v753 = vpow.pop %v752
        %v754 = vmul.f32 %v751, 1.442695
        %v755 = vpow.pop %v754
        %v756 = vsel %vm653, %v753, 0.0
        %757 = vadd.xlane.f32.xlu0 %v756
        %v758 = vpop.xlane.xlu0 %757
        %v759 = vsel %vm653, %v755, 0.0
        %760 = vadd.xlane.f32.xlu0 %v759
        %v761 = vpop.xlane.xlu0 %760
        %v762 = vrcp.pop %v758
        %v763 = vmul.f32 %v758, %v762
        %v764 = vsub.f32 1.0, %v763
        %v765 = vmul.f32 %v762, %v764
        %v766 = vadd.f32 %v762, %v765
        %vm767 = vweird.f32 %v758
        %vm768 = vweird.f32 %v762
        %vm769 = vmor %vm767, %vm768
        %v770 = vsel %vm769, %v762, %v766
        %v771 = vand.u32 2147483647, %v758
        %vm772 = vcmp.eq.f32.partialorder %v771, 8.507059e+37
        %v773 = vand.u32 %v758, 2147483648
        %v774 = vor.u32 1.1754944e-38, %v773
        %v775 = vsel %vm772, %v774, %v770
        %v776 = vmul.f32 %v753, %v775
        %v777 = vrcp.pop %v761
        %v778 = vmul.f32 %v761, %v777
        %v779 = vsub.f32 1.0, %v778
        %v780 = vmul.f32 %v777, %v779
        %v781 = vadd.f32 %v777, %v780
        %vm782 = vweird.f32 %v761
        %vm783 = vweird.f32 %v777
        %vm784 = vmor %vm782, %vm783
        %v785 = vsel %vm784, %v777, %v781
        %v786 = vand.u32 2147483647, %v761
        %vm787 = vcmp.eq.f32.partialorder %v786, 8.507059e+37
        %v788 = vand.u32 %v761, 2147483648
        %v789 = vor.u32 1.1754944e-38, %v788
        %v790 = vsel %vm787, %v789, %v785
        %v791 = vmul.f32 %v755, %v790
        %v792 = vmul.f32 %v776, %v649
        %v793 = vmul.f32 %v791, %v649
        %v794 = vsel %vm653, %v792, 0.0
        %795 = vadd.xlane.f32.xlu0 %v794
        %v796 = vpop.xlane.xlu0 %795
        %v797 = vsel %vm653, %v793, 0.0
        %798 = vadd.xlane.f32.xlu0 %v797
        %v799 = vpop.xlane.xlu0 %798
        %v800 = vadd.f32 %v796, 1e-13
        %v801 = vadd.f32 %v799, 1e-13
        %v802 = vrcp.pop %v800
        %v803 = vmul.f32 %v800, %v802
        %v804 = vsub.f32 1.0, %v803
        %v805 = vmul.f32 %v802, %v804
        %v806 = vadd.f32 %v802, %v805
        %vm807 = vweird.f32 %v800
        %vm808 = vweird.f32 %v802
        %vm809 = vmor %vm807, %vm808
        %v810 = vsel %vm809, %v802, %v806
        %v811 = vand.u32 2147483647, %v800
        %vm812 = vcmp.eq.f32.partialorder %v811, 8.507059e+37
        %v813 = vand.u32 %v800, 2147483648
        %v814 = vor.u32 1.1754944e-38, %v813
        %v815 = vsel %vm812, %v814, %v810
        %v816 = vmul.f32 %v792, %v815
        %v817 = vrcp.pop %v801
        %v818 = vmul.f32 %v801, %v817
        %v819 = vsub.f32 1.0, %v818
        %v820 = vmul.f32 %v817, %v819
        %v821 = vadd.f32 %v817, %v820
        %vm822 = vweird.f32 %v801
        %vm823 = vweird.f32 %v817
        %vm824 = vmor %vm822, %vm823
        %v825 = vsel %vm824, %v817, %v821
        %v826 = vand.u32 2147483647, %v801
        %vm827 = vcmp.eq.f32.partialorder %v826, 8.507059e+37
        %v828 = vand.u32 %v801, 2147483648
        %v829 = vor.u32 1.1754944e-38, %v828
        %v830 = vsel %vm827, %v829, %v825
        %v831 = vmul.f32 %v793, %v830
        %v832 = vpack.c.bf16 %v741, %v726
        %v834 = vsel %vm653, %v832, 0
        %836 = vmatpush.bf16.msra.mxu0 0
        %837 = vmatpush.bf16.msra.mxu0 0
        %838 = vmatpush.bf16.msra.mxu0 0
        %839 = vmatpush.bf16.msra.mxu0 0
        %840 = vmatpush.bf16.msra.mxu0 0
        %841 = vmatpush.bf16.msra.mxu0 0
        %842 = vmatpush.bf16.msra.mxu0 0
        %843 = vmatpush.bf16.msra.mxu0 %v619
        %844 = vmatmul.bf16.gmra.mxu0 %v834
        %v845 = vpop.f32.mrf.mxu0
        %v846 = vadd.f32 0.0, %v845
        %v847 = vpop.f32.mrf.mxu0
        %v848 = vadd.f32 0.0, %v847
        %849 = vdwg.mxu0
        %851 = vset.pattern.permute.xlu0 0
        %852 = vperm.xlu0 %851, %v616
        %v853 = vpop.permute.xlu0 %852
        %856 = vset.pattern.permute.xlu0 0
        %857 = vperm.xlu0 %856, %v617
        %v858 = vpop.permute.xlu0 %857
        %v860 = vmul.f32 %v846, %v853
        %v861 = vmul.f32 %v848, %v858
        %v862 = vpack.c.bf16 %v831, %v816
        %v864 = vsel %vm653, %v862, 0
        %866 = vmatpush.bf16.msra.mxu0 0
        %867 = vmatpush.bf16.msra.mxu0 0
        %868 = vmatpush.bf16.msra.mxu0 0
        %869 = vmatpush.bf16.msra.mxu0 0
        %870 = vmatpush.bf16.msra.mxu0 0
        %871 = vmatpush.bf16.msra.mxu0 0
        %872 = vmatpush.bf16.msra.mxu0 0
        %873 = vmatpush.bf16.msra.mxu0 %v618
        %874 = vmatmul.bf16.gmra.mxu0 %v864
        %v875 = vpop.f32.mrf.mxu0
        %v876 = vadd.f32 0.0, %v875
        %v877 = vpop.f32.mrf.mxu0
        %v878 = vadd.f32 0.0, %v877
        %879 = vdwg.mxu0
        %v880 = vmul.f32 %v876, %v853
        %v881 = vmul.f32 %v878, %v858
        %v882 = vsub.f32 %v611, %v860
        %v883 = vsub.f32 %v612, %v861
        %v884 = vmul.f32 %v611, %v860
        %v885 = vmul.f32 %v612, %v861
        %v886 = vsub.f32 %v613, %v880
        %v887 = vsub.f32 %v614, %v881
        %v888 = vmul.f32 %v613, %v880
        %v889 = vmul.f32 %v614, %v881
        %v890 = vld [vmem:[%s4] sm:$0xf]
        %v891 = vld [vmem:[%s4 + $0x4] sm:$0xf]
        %v892 = vld [vmem:[%s4 + $0x8] sm:$0xf]
        %v893 = vld [vmem:[%s4 + $0xc] sm:$0xf]
        %v894 = vld [vmem:[%s4 + $0x10] sm:$0xf]
        %v895 = vld [vmem:[%s4 + $0x14] sm:$0xf]
        %v896 = vld [vmem:[%s4 + $0x18] sm:$0xf]
        %v897 = vld [vmem:[%s4 + $0x1c] sm:$0xf]
        %v898 = vld [vmem:[%s4 + $0x20] sm:$0xf]
        %v899 = vld [vmem:[%s4 + $0x24] sm:$0xf]
        %v900 = vld [vmem:[%s4 + $0x28] sm:$0xf]
        %v901 = vld [vmem:[%s4 + $0x2c] sm:$0xf]
        %v902 = vld [vmem:[%s4 + $0x30] sm:$0xf]
        %v903 = vld [vmem:[%s4 + $0x34] sm:$0xf]
        %v904 = vld [vmem:[%s4 + $0x38] sm:$0xf]
        %v905 = vld [vmem:[%s4 + $0x3c] sm:$0xf]
        %v906 = vld [vmem:[%s4 + $0x40] sm:$0xf]
        %v907 = vld [vmem:[%s4 + $0x44] sm:$0xf]
        %v908 = vld [vmem:[%s4 + $0x48] sm:$0xf]
        %v909 = vld [vmem:[%s4 + $0x4c] sm:$0xf]
        %v910 = vld [vmem:[%s4 + $0x50] sm:$0xf]
        %v911 = vld [vmem:[%s4 + $0x54] sm:$0xf]
        %v912 = vld [vmem:[%s4 + $0x58] sm:$0xf]
        %v913 = vld [vmem:[%s4 + $0x5c] sm:$0xf]
        %v914 = vld [vmem:[%s4 + $0x60] sm:$0xf]
        %v915 = vld [vmem:[%s4 + $0x64] sm:$0xf]
        %v916 = vld [vmem:[%s4 + $0x68] sm:$0xf]
        %v917 = vld [vmem:[%s4 + $0x6c] sm:$0xf]
        %v918 = vld [vmem:[%s4 + $0x70] sm:$0xf]
        %v919 = vld [vmem:[%s4 + $0x74] sm:$0xf]
        %v920 = vld [vmem:[%s4 + $0x78] sm:$0xf]
        %v921 = vld [vmem:[%s4 + $0x7c] sm:$0xf]
        %v922 = vld [vmem:[%s4 + $0x80] sm:$0xf]
        %v923 = vld [vmem:[%s4 + $0x84] sm:$0xf]
        %v924 = vld [vmem:[%s4 + $0x88] sm:$0xf]
        %v925 = vld [vmem:[%s4 + $0x8c] sm:$0xf]
        %v926 = vld [vmem:[%s4 + $0x90] sm:$0xf]
        %v927 = vld [vmem:[%s4 + $0x94] sm:$0xf]
        %v928 = vld [vmem:[%s4 + $0x98] sm:$0xf]
        %v929 = vld [vmem:[%s4 + $0x9c] sm:$0xf]
        %v930 = vld [vmem:[%s4 + $0xa0] sm:$0xf]
        %v931 = vld [vmem:[%s4 + $0xa4] sm:$0xf]
        %v932 = vld [vmem:[%s4 + $0xa8] sm:$0xf]
        %v933 = vld [vmem:[%s4 + $0xac] sm:$0xf]
        %v934 = vld [vmem:[%s4 + $0xb0] sm:$0xf]
        %v935 = vld [vmem:[%s4 + $0xb4] sm:$0xf]
        %v936 = vld [vmem:[%s4 + $0xb8] sm:$0xf]
        %v937 = vld [vmem:[%s4 + $0xbc] sm:$0xf]
        %v938 = vld [vmem:[%s4 + $0xc0] sm:$0xf]
        %v939 = vld [vmem:[%s4 + $0xc4] sm:$0xf]
        %v940 = vld [vmem:[%s4 + $0xc8] sm:$0xf]
        %v941 = vld [vmem:[%s4 + $0xcc] sm:$0xf]
        %v942 = vld [vmem:[%s4 + $0xd0] sm:$0xf]
        %v943 = vld [vmem:[%s4 + $0xd4] sm:$0xf]
        %v944 = vld [vmem:[%s4 + $0xd8] sm:$0xf]
        %v945 = vld [vmem:[%s4 + $0xdc] sm:$0xf]
        %v946 = vld [vmem:[%s4 + $0xe0] sm:$0xf]
        %v947 = vld [vmem:[%s4 + $0xe4] sm:$0xf]
        %v948 = vld [vmem:[%s4 + $0xe8] sm:$0xf]
        %v949 = vld [vmem:[%s4 + $0xec] sm:$0xf]
        %v950 = vld [vmem:[%s4 + $0xf0] sm:$0xf]
        %v951 = vld [vmem:[%s4 + $0xf4] sm:$0xf]
        %v952 = vld [vmem:[%s4 + $0xf8] sm:$0xf]
        %v953 = vld [vmem:[%s4 + $0xfc] sm:$0xf]
        %v954 = vld [vmem:[%s5] sm:$0x1]
        %v955 = vpack.c.bf16 %v861, %v860
        %v956 = vpack.c.bf16 %v883, %v882
        %v957 = vpack.c.bf16 %v885, %v884
        %v959 = vperm.slane %v954, 0
        %v1025 = vunpack.c.l.b16 %v890
        %v1026 = vunpack.c.l.b16 %v891
        %v1027 = vunpack.c.l.b16 %v892
        %v1028 = vunpack.c.l.b16 %v893
        %v1029 = vunpack.c.l.b16 %v894
        %v1030 = vunpack.c.l.b16 %v895
        %v1031 = vunpack.c.l.b16 %v896
        %v1032 = vunpack.c.l.b16 %v897
        %v1033 = vunpack.c.l.b16 %v898
        %v1034 = vunpack.c.l.b16 %v899
        %v1035 = vunpack.c.l.b16 %v900
        %v1036 = vunpack.c.l.b16 %v901
        %v1037 = vunpack.c.l.b16 %v902
        %v1038 = vunpack.c.l.b16 %v903
        %v1039 = vunpack.c.l.b16 %v904
        %v1040 = vunpack.c.l.b16 %v905
        %v1041 = vunpack.c.l.b16 %v906
        %v1042 = vunpack.c.l.b16 %v907
        %v1043 = vunpack.c.l.b16 %v908
        %v1044 = vunpack.c.l.b16 %v909
        %v1045 = vunpack.c.l.b16 %v910
        %v1046 = vunpack.c.l.b16 %v911
        %v1047 = vunpack.c.l.b16 %v912
        %v1048 = vunpack.c.l.b16 %v913
        %v1049 = vunpack.c.l.b16 %v914
        %v1050 = vunpack.c.l.b16 %v915
        %v1051 = vunpack.c.l.b16 %v916
        %v1052 = vunpack.c.l.b16 %v917
        %v1053 = vunpack.c.l.b16 %v918
        %v1054 = vunpack.c.l.b16 %v919
        %v1055 = vunpack.c.l.b16 %v920
        %v1056 = vunpack.c.l.b16 %v921
        %v1057 = vunpack.c.l.b16 %v922
        %v1058 = vunpack.c.l.b16 %v923
        %v1059 = vunpack.c.l.b16 %v924
        %v1060 = vunpack.c.l.b16 %v925
        %v1061 = vunpack.c.l.b16 %v926
        %v1062 = vunpack.c.l.b16 %v927
        %v1063 = vunpack.c.l.b16 %v928
        %v1064 = vunpack.c.l.b16 %v929
        %v1065 = vunpack.c.l.b16 %v930
        %v1066 = vunpack.c.l.b16 %v931
        %v1067 = vunpack.c.l.b16 %v932
        %v1068 = vunpack.c.l.b16 %v933
        %v1069 = vunpack.c.l.b16 %v934
        %v1070 = vunpack.c.l.b16 %v935
        %v1071 = vunpack.c.l.b16 %v936
        %v1072 = vunpack.c.l.b16 %v937
        %v1073 = vunpack.c.l.b16 %v938
        %v1074 = vunpack.c.l.b16 %v939
        %v1075 = vunpack.c.l.b16 %v940
        %v1076 = vunpack.c.l.b16 %v941
        %v1077 = vunpack.c.l.b16 %v942
        %v1078 = vunpack.c.l.b16 %v943
        %v1079 = vunpack.c.l.b16 %v944
        %v1080 = vunpack.c.l.b16 %v945
        %v1081 = vunpack.c.l.b16 %v946
        %v1082 = vunpack.c.l.b16 %v947
        %v1083 = vunpack.c.l.b16 %v948
        %v1084 = vunpack.c.l.b16 %v949
        %v1085 = vunpack.c.l.b16 %v950
        %v1086 = vunpack.c.l.b16 %v951
        %v1087 = vunpack.c.l.b16 %v952
        %v1088 = vunpack.c.l.b16 %v953
        %v1089 = vpack.c.b16 %v1026, %v1025
        %v1090 = vpack.c.b16 %v1028, %v1027
        %v1091 = vpack.c.b16 %v1030, %v1029
        %v1092 = vpack.c.b16 %v1032, %v1031
        %v1093 = vpack.c.b16 %v1034, %v1033
        %v1094 = vpack.c.b16 %v1036, %v1035
        %v1095 = vpack.c.b16 %v1038, %v1037
        %v1096 = vpack.c.b16 %v1040, %v1039
        %v1097 = vpack.c.b16 %v1042, %v1041
        %v1098 = vpack.c.b16 %v1044, %v1043
        %v1099 = vpack.c.b16 %v1046, %v1045
        %v1100 = vpack.c.b16 %v1048, %v1047
        %v1101 = vpack.c.b16 %v1050, %v1049
        %v1102 = vpack.c.b16 %v1052, %v1051
        %v1103 = vpack.c.b16 %v1054, %v1053
        %v1104 = vpack.c.b16 %v1056, %v1055
        %v1105 = vpack.c.b16 %v1058, %v1057
        %v1106 = vpack.c.b16 %v1060, %v1059
        %v1107 = vpack.c.b16 %v1062, %v1061
        %v1108 = vpack.c.b16 %v1064, %v1063
        %v1109 = vpack.c.b16 %v1066, %v1065
        %v1110 = vpack.c.b16 %v1068, %v1067
        %v1111 = vpack.c.b16 %v1070, %v1069
        %v1112 = vpack.c.b16 %v1072, %v1071
        %v1113 = vpack.c.b16 %v1074, %v1073
        %v1114 = vpack.c.b16 %v1076, %v1075
        %v1115 = vpack.c.b16 %v1078, %v1077
        %v1116 = vpack.c.b16 %v1080, %v1079
        %v1117 = vpack.c.b16 %v1082, %v1081
        %v1118 = vpack.c.b16 %v1084, %v1083
        %v1119 = vpack.c.b16 %v1086, %v1085
        %v1120 = vpack.c.b16 %v1088, %v1087
        %1153 = vmatpush.bf16.msra.mxu0 %v1096
        %1154 = vmatpush.bf16.msra.mxu0 %v1095
        %1155 = vmatpush.bf16.msra.mxu0 %v1094
        %1156 = vmatpush.bf16.msra.mxu0 %v1093
        %1157 = vmatpush.bf16.msra.mxu0 %v1092
        %1158 = vmatpush.bf16.msra.mxu0 %v1091
        %1159 = vmatpush.bf16.msra.mxu0 %v1090
        %1160 = vmatpush.bf16.msra.mxu0 %v1089
        %1161 = vmatmul.bf16.gmra.mxu0 %v618
        %v1162 = vpop.f32.mrf.mxu0
        %v1163 = vadd.f32 %v959, %v1162
        %v1164 = vpop.f32.mrf.mxu0
        %1165 = vdwg.mxu0
        %1166 = vmatpush.bf16.msra.mxu0 %v1104
        %1167 = vmatpush.bf16.msra.mxu0 %v1103
        %1168 = vmatpush.bf16.msra.mxu0 %v1102
        %1169 = vmatpush.bf16.msra.mxu0 %v1101
        %1170 = vmatpush.bf16.msra.mxu0 %v1100
        %1171 = vmatpush.bf16.msra.mxu0 %v1099
        %1172 = vmatpush.bf16.msra.mxu0 %v1098
        %1173 = vmatpush.bf16.msra.mxu0 %v1097
        %1174 = vmatmul.bf16.gmra.mxu0 %v955
        %v1175 = vpop.f32.mrf.mxu0
        %v1176 = vadd.f32 %v1163, %v1175
        %v1177 = vpop.f32.mrf.mxu0
        %1178 = vdwg.mxu0
        %1179 = vmatpush.bf16.msra.mxu0 %v1112
        %1180 = vmatpush.bf16.msra.mxu0 %v1111
        %1181 = vmatpush.bf16.msra.mxu0 %v1110
        %1182 = vmatpush.bf16.msra.mxu0 %v1109
        %1183 = vmatpush.bf16.msra.mxu0 %v1108
        %1184 = vmatpush.bf16.msra.mxu0 %v1107
        %1185 = vmatpush.bf16.msra.mxu0 %v1106
        %1186 = vmatpush.bf16.msra.mxu0 %v1105
        %1187 = vmatmul.bf16.gmra.mxu0 %v956
        %v1188 = vpop.f32.mrf.mxu0
        %v1189 = vadd.f32 %v1176, %v1188
        %v1190 = vpop.f32.mrf.mxu0
        %1191 = vdwg.mxu0
        %1192 = vmatpush.bf16.msra.mxu0 %v1120
        %1193 = vmatpush.bf16.msra.mxu0 %v1119
        %1194 = vmatpush.bf16.msra.mxu0 %v1118
        %1195 = vmatpush.bf16.msra.mxu0 %v1117
        %1196 = vmatpush.bf16.msra.mxu0 %v1116
        %1197 = vmatpush.bf16.msra.mxu0 %v1115
        %1198 = vmatpush.bf16.msra.mxu0 %v1114
        %1199 = vmatpush.bf16.msra.mxu0 %v1113
        %1200 = vmatmul.bf16.gmra.mxu0 %v957
        %v1201 = vpop.f32.mrf.mxu0
        %v1202 = vadd.f32 %v1189, %v1201
        %v1203 = vpop.f32.mrf.mxu0
        %1204 = vdwg.mxu0
        %v1205 = vmax.f32 %v1202, 0.0
        %v1206 = vpack.c.bf16 %v881, %v880
        %v1207 = vpack.c.bf16 %v887, %v886
        %v1208 = vpack.c.bf16 %v889, %v888
        %1209 = vmatpush.bf16.msra.mxu0 %v1096
        %1210 = vmatpush.bf16.msra.mxu0 %v1095
        %1211 = vmatpush.bf16.msra.mxu0 %v1094
        %1212 = vmatpush.bf16.msra.mxu0 %v1093
        %1213 = vmatpush.bf16.msra.mxu0 %v1092
        %1214 = vmatpush.bf16.msra.mxu0 %v1091
        %1215 = vmatpush.bf16.msra.mxu0 %v1090
        %1216 = vmatpush.bf16.msra.mxu0 %v1089
        %1217 = vmatmul.bf16.gmra.mxu0 %v619
        %v1218 = vpop.f32.mrf.mxu0
        %v1219 = vadd.f32 %v959, %v1218
        %v1220 = vpop.f32.mrf.mxu0
        %1221 = vdwg.mxu0
        %1222 = vmatpush.bf16.msra.mxu0 %v1104
        %1223 = vmatpush.bf16.msra.mxu0 %v1103
        %1224 = vmatpush.bf16.msra.mxu0 %v1102
        %1225 = vmatpush.bf16.msra.mxu0 %v1101
        %1226 = vmatpush.bf16.msra.mxu0 %v1100
        %1227 = vmatpush.bf16.msra.mxu0 %v1099
        %1228 = vmatpush.bf16.msra.mxu0 %v1098
        %1229 = vmatpush.bf16.msra.mxu0 %v1097
        %1230 = vmatmul.bf16.gmra.mxu0 %v1206
        %v1231 = vpop.f32.mrf.mxu0
        %v1232 = vadd.f32 %v1219, %v1231
        %v1233 = vpop.f32.mrf.mxu0
        %1234 = vdwg.mxu0
        %1235 = vmatpush.bf16.msra.mxu0 %v1112
        %1236 = vmatpush.bf16.msra.mxu0 %v1111
        %1237 = vmatpush.bf16.msra.mxu0 %v1110
        %1238 = vmatpush.bf16.msra.mxu0 %v1109
        %1239 = vmatpush.bf16.msra.mxu0 %v1108
        %1240 = vmatpush.bf16.msra.mxu0 %v1107
        %1241 = vmatpush.bf16.msra.mxu0 %v1106
        %1242 = vmatpush.bf16.msra.mxu0 %v1105
        %1243 = vmatmul.bf16.gmra.mxu0 %v1207
        %v1244 = vpop.f32.mrf.mxu0
        %v1245 = vadd.f32 %v1232, %v1244
        %v1246 = vpop.f32.mrf.mxu0
        %1247 = vdwg.mxu0
        %1248 = vmatpush.bf16.msra.mxu0 %v1120
        %1249 = vmatpush.bf16.msra.mxu0 %v1119
        %1250 = vmatpush.bf16.msra.mxu0 %v1118
        %1251 = vmatpush.bf16.msra.mxu0 %v1117
        %1252 = vmatpush.bf16.msra.mxu0 %v1116
        %1253 = vmatpush.bf16.msra.mxu0 %v1115
        %1254 = vmatpush.bf16.msra.mxu0 %v1114
        %1255 = vmatpush.bf16.msra.mxu0 %v1113
        %1256 = vmatmul.bf16.gmra.mxu0 %v1208
        %v1257 = vpop.f32.mrf.mxu0
        %v1258 = vadd.f32 %v1245, %v1257
        %v1259 = vpop.f32.mrf.mxu0
        %1260 = vdwg.mxu0
        %v1261 = vmax.f32 %v1258, 0.0
        %v1262 = vsub.f32 %v1205, %v1261
        %v1263 = vmul.f32 %v1205, %v1261
        %v1264 = vpack.c.bf16 %v1205, %v1205
        %v1265 = vpack.c.bf16 %v1261, %v1261
        %v1266 = vpack.c.bf16 %v1262, %v1262
        %v1267 = vpack.c.bf16 %v1263, %v1263
        %v1268 = vld [vmem:[%s6] sm:$0xf]
        %v1269 = vld [vmem:[%s6 + $0x4] sm:$0xf]
        %v1270 = vld [vmem:[%s6 + $0x8] sm:$0xf]
        %v1271 = vld [vmem:[%s6 + $0xc] sm:$0xf]
        %v1272 = vld [vmem:[%s6 + $0x10] sm:$0xf]
        %v1273 = vld [vmem:[%s6 + $0x14] sm:$0xf]
        %v1274 = vld [vmem:[%s6 + $0x18] sm:$0xf]
        %v1275 = vld [vmem:[%s6 + $0x1c] sm:$0xf]
        %v1276 = vld [vmem:[%s6 + $0x20] sm:$0xf]
        %v1277 = vld [vmem:[%s6 + $0x24] sm:$0xf]
        %v1278 = vld [vmem:[%s6 + $0x28] sm:$0xf]
        %v1279 = vld [vmem:[%s6 + $0x2c] sm:$0xf]
        %v1280 = vld [vmem:[%s6 + $0x30] sm:$0xf]
        %v1281 = vld [vmem:[%s6 + $0x34] sm:$0xf]
        %v1282 = vld [vmem:[%s6 + $0x38] sm:$0xf]
        %v1283 = vld [vmem:[%s6 + $0x3c] sm:$0xf]
        %v1284 = vld [vmem:[%s6 + $0x40] sm:$0xf]
        %v1285 = vld [vmem:[%s6 + $0x44] sm:$0xf]
        %v1286 = vld [vmem:[%s6 + $0x48] sm:$0xf]
        %v1287 = vld [vmem:[%s6 + $0x4c] sm:$0xf]
        %v1288 = vld [vmem:[%s6 + $0x50] sm:$0xf]
        %v1289 = vld [vmem:[%s6 + $0x54] sm:$0xf]
        %v1290 = vld [vmem:[%s6 + $0x58] sm:$0xf]
        %v1291 = vld [vmem:[%s6 + $0x5c] sm:$0xf]
        %v1292 = vld [vmem:[%s6 + $0x60] sm:$0xf]
        %v1293 = vld [vmem:[%s6 + $0x64] sm:$0xf]
        %v1294 = vld [vmem:[%s6 + $0x68] sm:$0xf]
        %v1295 = vld [vmem:[%s6 + $0x6c] sm:$0xf]
        %v1296 = vld [vmem:[%s6 + $0x70] sm:$0xf]
        %v1297 = vld [vmem:[%s6 + $0x74] sm:$0xf]
        %v1298 = vld [vmem:[%s6 + $0x78] sm:$0xf]
        %v1299 = vld [vmem:[%s6 + $0x7c] sm:$0xf]
        %v1300 = vld [vmem:[%s6 + $0x80] sm:$0xf]
        %v1301 = vld [vmem:[%s6 + $0x84] sm:$0xf]
        %v1302 = vld [vmem:[%s6 + $0x88] sm:$0xf]
        %v1303 = vld [vmem:[%s6 + $0x8c] sm:$0xf]
        %v1304 = vld [vmem:[%s6 + $0x90] sm:$0xf]
        %v1305 = vld [vmem:[%s6 + $0x94] sm:$0xf]
        %v1306 = vld [vmem:[%s6 + $0x98] sm:$0xf]
        %v1307 = vld [vmem:[%s6 + $0x9c] sm:$0xf]
        %v1308 = vld [vmem:[%s6 + $0xa0] sm:$0xf]
        %v1309 = vld [vmem:[%s6 + $0xa4] sm:$0xf]
        %v1310 = vld [vmem:[%s6 + $0xa8] sm:$0xf]
        %v1311 = vld [vmem:[%s6 + $0xac] sm:$0xf]
        %v1312 = vld [vmem:[%s6 + $0xb0] sm:$0xf]
        %v1313 = vld [vmem:[%s6 + $0xb4] sm:$0xf]
        %v1314 = vld [vmem:[%s6 + $0xb8] sm:$0xf]
        %v1315 = vld [vmem:[%s6 + $0xbc] sm:$0xf]
        %v1316 = vld [vmem:[%s6 + $0xc0] sm:$0xf]
        %v1317 = vld [vmem:[%s6 + $0xc4] sm:$0xf]
        %v1318 = vld [vmem:[%s6 + $0xc8] sm:$0xf]
        %v1319 = vld [vmem:[%s6 + $0xcc] sm:$0xf]
        %v1320 = vld [vmem:[%s6 + $0xd0] sm:$0xf]
        %v1321 = vld [vmem:[%s6 + $0xd4] sm:$0xf]
        %v1322 = vld [vmem:[%s6 + $0xd8] sm:$0xf]
        %v1323 = vld [vmem:[%s6 + $0xdc] sm:$0xf]
        %v1324 = vld [vmem:[%s6 + $0xe0] sm:$0xf]
        %v1325 = vld [vmem:[%s6 + $0xe4] sm:$0xf]
        %v1326 = vld [vmem:[%s6 + $0xe8] sm:$0xf]
        %v1327 = vld [vmem:[%s6 + $0xec] sm:$0xf]
        %v1328 = vld [vmem:[%s6 + $0xf0] sm:$0xf]
        %v1329 = vld [vmem:[%s6 + $0xf4] sm:$0xf]
        %v1330 = vld [vmem:[%s6 + $0xf8] sm:$0xf]
        %v1331 = vld [vmem:[%s6 + $0xfc] sm:$0xf]
        %v1332 = vld [vmem:[%s7] sm:$0x1]
        %v1397 = vunpack.c.l.b16 %v1268
        %v1398 = vunpack.c.l.b16 %v1269
        %v1399 = vunpack.c.l.b16 %v1270
        %v1400 = vunpack.c.l.b16 %v1271
        %v1401 = vunpack.c.l.b16 %v1272
        %v1402 = vunpack.c.l.b16 %v1273
        %v1403 = vunpack.c.l.b16 %v1274
        %v1404 = vunpack.c.l.b16 %v1275
        %v1405 = vunpack.c.l.b16 %v1276
        %v1406 = vunpack.c.l.b16 %v1277
        %v1407 = vunpack.c.l.b16 %v1278
        %v1408 = vunpack.c.l.b16 %v1279
        %v1409 = vunpack.c.l.b16 %v1280
        %v1410 = vunpack.c.l.b16 %v1281
        %v1411 = vunpack.c.l.b16 %v1282
        %v1412 = vunpack.c.l.b16 %v1283
        %v1413 = vunpack.c.l.b16 %v1284
        %v1414 = vunpack.c.l.b16 %v1285
        %v1415 = vunpack.c.l.b16 %v1286
        %v1416 = vunpack.c.l.b16 %v1287
        %v1417 = vunpack.c.l.b16 %v1288
        %v1418 = vunpack.c.l.b16 %v1289
        %v1419 = vunpack.c.l.b16 %v1290
        %v1420 = vunpack.c.l.b16 %v1291
        %v1421 = vunpack.c.l.b16 %v1292
        %v1422 = vunpack.c.l.b16 %v1293
        %v1423 = vunpack.c.l.b16 %v1294
        %v1424 = vunpack.c.l.b16 %v1295
        %v1425 = vunpack.c.l.b16 %v1296
        %v1426 = vunpack.c.l.b16 %v1297
        %v1427 = vunpack.c.l.b16 %v1298
        %v1428 = vunpack.c.l.b16 %v1299
        %v1429 = vunpack.c.l.b16 %v1300
        %v1430 = vunpack.c.l.b16 %v1301
        %v1431 = vunpack.c.l.b16 %v1302
        %v1432 = vunpack.c.l.b16 %v1303
        %v1433 = vunpack.c.l.b16 %v1304
        %v1434 = vunpack.c.l.b16 %v1305
        %v1435 = vunpack.c.l.b16 %v1306
        %v1436 = vunpack.c.l.b16 %v1307
        %v1437 = vunpack.c.l.b16 %v1308
        %v1438 = vunpack.c.l.b16 %v1309
        %v1439 = vunpack.c.l.b16 %v1310
        %v1440 = vunpack.c.l.b16 %v1311
        %v1441 = vunpack.c.l.b16 %v1312
        %v1442 = vunpack.c.l.b16 %v1313
        %v1443 = vunpack.c.l.b16 %v1314
        %v1444 = vunpack.c.l.b16 %v1315
        %v1445 = vunpack.c.l.b16 %v1316
        %v1446 = vunpack.c.l.b16 %v1317
        %v1447 = vunpack.c.l.b16 %v1318
        %v1448 = vunpack.c.l.b16 %v1319
        %v1449 = vunpack.c.l.b16 %v1320
        %v1450 = vunpack.c.l.b16 %v1321
        %v1451 = vunpack.c.l.b16 %v1322
        %v1452 = vunpack.c.l.b16 %v1323
        %v1453 = vunpack.c.l.b16 %v1324
        %v1454 = vunpack.c.l.b16 %v1325
        %v1455 = vunpack.c.l.b16 %v1326
        %v1456 = vunpack.c.l.b16 %v1327
        %v1457 = vunpack.c.l.b16 %v1328
        %v1458 = vunpack.c.l.b16 %v1329
        %v1459 = vunpack.c.l.b16 %v1330
        %v1460 = vunpack.c.l.b16 %v1331
        %v1461 = vpack.c.b16 %v1398, %v1397
        %v1462 = vpack.c.b16 %v1400, %v1399
        %v1463 = vpack.c.b16 %v1402, %v1401
        %v1464 = vpack.c.b16 %v1404, %v1403
        %v1465 = vpack.c.b16 %v1406, %v1405
        %v1466 = vpack.c.b16 %v1408, %v1407
        %v1467 = vpack.c.b16 %v1410, %v1409
        %v1468 = vpack.c.b16 %v1412, %v1411
        %v1469 = vpack.c.b16 %v1414, %v1413
        %v1470 = vpack.c.b16 %v1416, %v1415
        %v1471 = vpack.c.b16 %v1418, %v1417
        %v1472 = vpack.c.b16 %v1420, %v1419
        %v1473 = vpack.c.b16 %v1422, %v1421
        %v1474 = vpack.c.b16 %v1424, %v1423
        %v1475 = vpack.c.b16 %v1426, %v1425
        %v1476 = vpack.c.b16 %v1428, %v1427
        %v1477 = vpack.c.b16 %v1430, %v1429
        %v1478 = vpack.c.b16 %v1432, %v1431
        %v1479 = vpack.c.b16 %v1434, %v1433
        %v1480 = vpack.c.b16 %v1436, %v1435
        %v1481 = vpack.c.b16 %v1438, %v1437
        %v1482 = vpack.c.b16 %v1440, %v1439
        %v1483 = vpack.c.b16 %v1442, %v1441
        %v1484 = vpack.c.b16 %v1444, %v1443
        %v1485 = vpack.c.b16 %v1446, %v1445
        %v1486 = vpack.c.b16 %v1448, %v1447
        %v1487 = vpack.c.b16 %v1450, %v1449
        %v1488 = vpack.c.b16 %v1452, %v1451
        %v1489 = vpack.c.b16 %v1454, %v1453
        %v1490 = vpack.c.b16 %v1456, %v1455
        %v1491 = vpack.c.b16 %v1458, %v1457
        %v1492 = vpack.c.b16 %v1460, %v1459
        %1525 = vmatpush.bf16.msra.mxu0 %v1468
        %1526 = vmatpush.bf16.msra.mxu0 %v1467
        %1527 = vmatpush.bf16.msra.mxu0 %v1466
        %1528 = vmatpush.bf16.msra.mxu0 %v1465
        %1529 = vmatpush.bf16.msra.mxu0 %v1464
        %1530 = vmatpush.bf16.msra.mxu0 %v1463
        %1531 = vmatpush.bf16.msra.mxu0 %v1462
        %1532 = vmatpush.bf16.msra.mxu0 %v1461
        %1533 = vmatmul.bf16.gmra.mxu0 %v1264
        %v1534 = vpop.f32.mrf.mxu0
        %v1535 = vadd.f32 %v1332, %v1534
        %v1536 = vpop.f32.mrf.mxu0
        %1537 = vdwg.mxu0
        %1538 = vmatpush.bf16.msra.mxu0 %v1476
        %1539 = vmatpush.bf16.msra.mxu0 %v1475
        %1540 = vmatpush.bf16.msra.mxu0 %v1474
        %1541 = vmatpush.bf16.msra.mxu0 %v1473
        %1542 = vmatpush.bf16.msra.mxu0 %v1472
        %1543 = vmatpush.bf16.msra.mxu0 %v1471
        %1544 = vmatpush.bf16.msra.mxu0 %v1470
        %1545 = vmatpush.bf16.msra.mxu0 %v1469
        %1546 = vmatmul.bf16.gmra.mxu0 %v1265
        %v1547 = vpop.f32.mrf.mxu0
        %v1548 = vadd.f32 %v1535, %v1547
        %v1549 = vpop.f32.mrf.mxu0
        %1550 = vdwg.mxu0
        %1551 = vmatpush.bf16.msra.mxu0 %v1484
        %1552 = vmatpush.bf16.msra.mxu0 %v1483
        %1553 = vmatpush.bf16.msra.mxu0 %v1482
        %1554 = vmatpush.bf16.msra.mxu0 %v1481
        %1555 = vmatpush.bf16.msra.mxu0 %v1480
        %1556 = vmatpush.bf16.msra.mxu0 %v1479
        %1557 = vmatpush.bf16.msra.mxu0 %v1478
        %1558 = vmatpush.bf16.msra.mxu0 %v1477
        %1559 = vmatmul.bf16.gmra.mxu0 %v1266
        %v1560 = vpop.f32.mrf.mxu0
        %v1561 = vadd.f32 %v1548, %v1560
        %v1562 = vpop.f32.mrf.mxu0
        %1563 = vdwg.mxu0
        %1564 = vmatpush.bf16.msra.mxu0 %v1492
        %1565 = vmatpush.bf16.msra.mxu0 %v1491
        %1566 = vmatpush.bf16.msra.mxu0 %v1490
        %1567 = vmatpush.bf16.msra.mxu0 %v1489
        %1568 = vmatpush.bf16.msra.mxu0 %v1488
        %1569 = vmatpush.bf16.msra.mxu0 %v1487
        %1570 = vmatpush.bf16.msra.mxu0 %v1486
        %1571 = vmatpush.bf16.msra.mxu0 %v1485
        %1572 = vmatmul.bf16.gmra.mxu0 %v1267
        %v1573 = vpop.f32.mrf.mxu0
        %v1574 = vadd.f32 %v1561, %v1573
        %v1575 = vpop.f32.mrf.mxu0
        %1576 = vdwg.mxu0
        %v1577 = vpack.c.bf16 %v1574, %v1574
        %v1578 = vld [vmem:[%s8] sm:$0xf]
        %v1579 = vld [vmem:[%s8 + $0x4] sm:$0xf]
        %v1580 = vld [vmem:[%s8 + $0x8] sm:$0xf]
        %v1581 = vld [vmem:[%s8 + $0xc] sm:$0xf]
        %v1582 = vld [vmem:[%s8 + $0x10] sm:$0xf]
        %v1583 = vld [vmem:[%s8 + $0x14] sm:$0xf]
        %v1584 = vld [vmem:[%s8 + $0x18] sm:$0xf]
        %v1585 = vld [vmem:[%s8 + $0x1c] sm:$0xf]
        %v1586 = vld [vmem:[%s8 + $0x20] sm:$0xf]
        %v1587 = vld [vmem:[%s8 + $0x24] sm:$0xf]
        %v1588 = vld [vmem:[%s8 + $0x28] sm:$0xf]
        %v1589 = vld [vmem:[%s8 + $0x2c] sm:$0xf]
        %v1590 = vld [vmem:[%s8 + $0x30] sm:$0xf]
        %v1591 = vld [vmem:[%s8 + $0x34] sm:$0xf]
        %v1592 = vld [vmem:[%s8 + $0x38] sm:$0xf]
        %v1593 = vld [vmem:[%s8 + $0x3c] sm:$0xf]
        %v1594 = vld [vmem:[%s9] sm:$0x1]
        %v1611 = vunpack.c.l.b16 %v1578
        %v1612 = vunpack.c.l.b16 %v1579
        %v1613 = vunpack.c.l.b16 %v1580
        %v1614 = vunpack.c.l.b16 %v1581
        %v1615 = vunpack.c.l.b16 %v1582
        %v1616 = vunpack.c.l.b16 %v1583
        %v1617 = vunpack.c.l.b16 %v1584
        %v1618 = vunpack.c.l.b16 %v1585
        %v1619 = vunpack.c.l.b16 %v1586
        %v1620 = vunpack.c.l.b16 %v1587
        %v1621 = vunpack.c.l.b16 %v1588
        %v1622 = vunpack.c.l.b16 %v1589
        %v1623 = vunpack.c.l.b16 %v1590
        %v1624 = vunpack.c.l.b16 %v1591
        %v1625 = vunpack.c.l.b16 %v1592
        %v1626 = vunpack.c.l.b16 %v1593
        %v1627 = vpack.c.b16 %v1612, %v1611
        %v1628 = vpack.c.b16 %v1614, %v1613
        %v1629 = vpack.c.b16 %v1616, %v1615
        %v1630 = vpack.c.b16 %v1618, %v1617
        %v1631 = vpack.c.b16 %v1620, %v1619
        %v1632 = vpack.c.b16 %v1622, %v1621
        %v1633 = vpack.c.b16 %v1624, %v1623
        %v1634 = vpack.c.b16 %v1626, %v1625
        %1643 = vmatpush.bf16.msra.mxu0 %v1634
        %1644 = vmatpush.bf16.msra.mxu0 %v1633
        %1645 = vmatpush.bf16.msra.mxu0 %v1632
        %1646 = vmatpush.bf16.msra.mxu0 %v1631
        %1647 = vmatpush.bf16.msra.mxu0 %v1630
        %1648 = vmatpush.bf16.msra.mxu0 %v1629
        %1649 = vmatpush.bf16.msra.mxu0 %v1628
        %1650 = vmatpush.bf16.msra.mxu0 %v1627
        %1651 = vmatmul.bf16.gmra.mxu0 %v1577
        %v1652 = vpop.f32.mrf.mxu0
        %v1653 = vadd.f32 %v1594, %v1652
        %v1654 = vpop.f32.mrf.mxu0
        %1655 = vdwg.mxu0
        %v1656 = vtanh.pop %v1653
        %v1657 = vpack.c.bf16 %v1656, %v1656
        %v1658 = vld [vmem:[%s10] sm:$0xf]
        %v1659 = vld [vmem:[%s10 + $0x4] sm:$0xf]
        %v1660 = vld [vmem:[%s10 + $0x8] sm:$0xf]
        %v1661 = vld [vmem:[%s10 + $0xc] sm:$0xf]
        %v1662 = vld [vmem:[%s10 + $0x10] sm:$0xf]
        %v1663 = vld [vmem:[%s10 + $0x14] sm:$0xf]
        %v1664 = vld [vmem:[%s10 + $0x18] sm:$0xf]
        %v1665 = vld [vmem:[%s10 + $0x1c] sm:$0xf]
        %v1666 = vld [vmem:[%s10 + $0x20] sm:$0xf]
        %v1667 = vld [vmem:[%s10 + $0x24] sm:$0xf]
        %v1668 = vld [vmem:[%s10 + $0x28] sm:$0xf]
        %v1669 = vld [vmem:[%s10 + $0x2c] sm:$0xf]
        %v1670 = vld [vmem:[%s10 + $0x30] sm:$0xf]
        %v1671 = vld [vmem:[%s10 + $0x34] sm:$0xf]
        %v1672 = vld [vmem:[%s10 + $0x38] sm:$0xf]
        %v1673 = vld [vmem:[%s10 + $0x3c] sm:$0xf]
        %v1674 = vld [vmem:[%s11] sm:$0x1]
        %v1691 = vunpack.c.l.b16 %v1658
        %v1692 = vunpack.c.l.b16 %v1659
        %v1693 = vunpack.c.l.b16 %v1660
        %v1694 = vunpack.c.l.b16 %v1661
        %v1695 = vunpack.c.l.b16 %v1662
        %v1696 = vunpack.c.l.b16 %v1663
        %v1697 = vunpack.c.l.b16 %v1664
        %v1698 = vunpack.c.l.b16 %v1665
        %v1699 = vunpack.c.l.b16 %v1666
        %v1700 = vunpack.c.l.b16 %v1667
        %v1701 = vunpack.c.l.b16 %v1668
        %v1702 = vunpack.c.l.b16 %v1669
        %v1703 = vunpack.c.l.b16 %v1670
        %v1704 = vunpack.c.l.b16 %v1671
        %v1705 = vunpack.c.l.b16 %v1672
        %v1706 = vunpack.c.l.b16 %v1673
        %v1707 = vpack.c.b16 %v1692, %v1691
        %v1708 = vpack.c.b16 %v1694, %v1693
        %v1709 = vpack.c.b16 %v1696, %v1695
        %v1710 = vpack.c.b16 %v1698, %v1697
        %v1711 = vpack.c.b16 %v1700, %v1699
        %v1712 = vpack.c.b16 %v1702, %v1701
        %v1713 = vpack.c.b16 %v1704, %v1703
        %v1714 = vpack.c.b16 %v1706, %v1705
        %1723 = vmatpush.bf16.msra.mxu0 %v1714
        %1724 = vmatpush.bf16.msra.mxu0 %v1713
        %1725 = vmatpush.bf16.msra.mxu0 %v1712
        %1726 = vmatpush.bf16.msra.mxu0 %v1711
        %1727 = vmatpush.bf16.msra.mxu0 %v1710
        %1728 = vmatpush.bf16.msra.mxu0 %v1709
        %1729 = vmatpush.bf16.msra.mxu0 %v1708
        %1730 = vmatpush.bf16.msra.mxu0 %v1707
        %1731 = vmatmul.bf16.gmra.mxu0 %v1657
        %v1732 = vpop.f32.mrf.mxu0
        %v1733 = vadd.f32 %v1674, %v1732
        %v1734 = vpop.f32.mrf.mxu0
        %1735 = vdwg.mxu0
        %v1736 = vmax.f32 %v1733, 0.0
        %v1737 = vpack.c.bf16 %v1736, %v1736
        %v1738 = vld [vmem:[%s12] sm:$0xf]
        %v1739 = vld [vmem:[%s12 + $0x4] sm:$0xf]
        %v1740 = vld [vmem:[%s12 + $0x8] sm:$0xf]
        %v1741 = vld [vmem:[%s12 + $0xc] sm:$0xf]
        %v1742 = vld [vmem:[%s12 + $0x10] sm:$0xf]
        %v1743 = vld [vmem:[%s12 + $0x14] sm:$0xf]
        %v1744 = vld [vmem:[%s12 + $0x18] sm:$0xf]
        %v1745 = vld [vmem:[%s12 + $0x1c] sm:$0xf]
        %v1746 = vld [vmem:[%s12 + $0x20] sm:$0xf]
        %v1747 = vld [vmem:[%s12 + $0x24] sm:$0xf]
        %v1748 = vld [vmem:[%s12 + $0x28] sm:$0xf]
        %v1749 = vld [vmem:[%s12 + $0x2c] sm:$0xf]
        %v1750 = vld [vmem:[%s12 + $0x30] sm:$0xf]
        %v1751 = vld [vmem:[%s12 + $0x34] sm:$0xf]
        %v1752 = vld [vmem:[%s12 + $0x38] sm:$0xf]
        %v1753 = vld [vmem:[%s12 + $0x3c] sm:$0xf]
        %v1754 = vld [vmem:[%s13] sm:$0x1]
        %v1771 = vunpack.c.l.b16 %v1738
        %v1772 = vunpack.c.l.b16 %v1739
        %v1773 = vunpack.c.l.b16 %v1740
        %v1774 = vunpack.c.l.b16 %v1741
        %v1775 = vunpack.c.l.b16 %v1742
        %v1776 = vunpack.c.l.b16 %v1743
        %v1777 = vunpack.c.l.b16 %v1744
        %v1778 = vunpack.c.l.b16 %v1745
        %v1779 = vunpack.c.l.b16 %v1746
        %v1780 = vunpack.c.l.b16 %v1747
        %v1781 = vunpack.c.l.b16 %v1748
        %v1782 = vunpack.c.l.b16 %v1749
        %v1783 = vunpack.c.l.b16 %v1750
        %v1784 = vunpack.c.l.b16 %v1751
        %v1785 = vunpack.c.l.b16 %v1752
        %v1786 = vunpack.c.l.b16 %v1753
        %v1787 = vpack.c.b16 %v1772, %v1771
        %v1788 = vpack.c.b16 %v1774, %v1773
        %v1789 = vpack.c.b16 %v1776, %v1775
        %v1790 = vpack.c.b16 %v1778, %v1777
        %v1791 = vpack.c.b16 %v1780, %v1779
        %v1792 = vpack.c.b16 %v1782, %v1781
        %v1793 = vpack.c.b16 %v1784, %v1783
        %v1794 = vpack.c.b16 %v1786, %v1785
        %1803 = vmatpush.bf16.msra.mxu0 %v1794
        %1804 = vmatpush.bf16.msra.mxu0 %v1793
        %1805 = vmatpush.bf16.msra.mxu0 %v1792
        %1806 = vmatpush.bf16.msra.mxu0 %v1791
        %1807 = vmatpush.bf16.msra.mxu0 %v1790
        %1808 = vmatpush.bf16.msra.mxu0 %v1789
        %1809 = vmatpush.bf16.msra.mxu0 %v1788
        %1810 = vmatpush.bf16.msra.mxu0 %v1787
        %1811 = vmatmul.bf16.gmra.mxu0 %v1737
        %v1812 = vpop.f32.mrf.mxu0
        %v1813 = vadd.f32 %v1754, %v1812
        %v1814 = vpop.f32.mrf.mxu0
        %1815 = vdwg.mxu0
        %v1816 = vld [vmem:[%s14] sm:$0xf]
        %v1817 = vld [vmem:[%s14 + $0x4] sm:$0xf]
        %v1818 = vld [vmem:[%s14 + $0x8] sm:$0xf]
        %v1819 = vld [vmem:[%s14 + $0xc] sm:$0xf]
        %v1820 = vld [vmem:[%s14 + $0x10] sm:$0xf]
        %v1821 = vld [vmem:[%s14 + $0x14] sm:$0xf]
        %v1822 = vld [vmem:[%s14 + $0x18] sm:$0xf]
        %v1823 = vld [vmem:[%s14 + $0x1c] sm:$0xf]
        %v1824 = vld [vmem:[%s14 + $0x20] sm:$0xf]
        %v1825 = vld [vmem:[%s14 + $0x24] sm:$0xf]
        %v1826 = vld [vmem:[%s14 + $0x28] sm:$0xf]
        %v1827 = vld [vmem:[%s14 + $0x2c] sm:$0xf]
        %v1828 = vld [vmem:[%s14 + $0x30] sm:$0xf]
        %v1829 = vld [vmem:[%s14 + $0x34] sm:$0xf]
        %v1830 = vld [vmem:[%s14 + $0x38] sm:$0xf]
        %v1831 = vld [vmem:[%s14 + $0x3c] sm:$0xf]
        %v1832 = vld [vmem:[%s15] sm:$0x1]
        %v1849 = vunpack.c.l.b16 %v1816
        %v1850 = vunpack.c.l.b16 %v1817
        %v1851 = vunpack.c.l.b16 %v1818
        %v1852 = vunpack.c.l.b16 %v1819
        %v1853 = vunpack.c.l.b16 %v1820
        %v1854 = vunpack.c.l.b16 %v1821
        %v1855 = vunpack.c.l.b16 %v1822
        %v1856 = vunpack.c.l.b16 %v1823
        %v1857 = vunpack.c.l.b16 %v1824
        %v1858 = vunpack.c.l.b16 %v1825
        %v1859 = vunpack.c.l.b16 %v1826
        %v1860 = vunpack.c.l.b16 %v1827
        %v1861 = vunpack.c.l.b16 %v1828
        %v1862 = vunpack.c.l.b16 %v1829
        %v1863 = vunpack.c.l.b16 %v1830
        %v1864 = vunpack.c.l.b16 %v1831
        %v1865 = vpack.c.b16 %v1850, %v1849
        %v1866 = vpack.c.b16 %v1852, %v1851
        %v1867 = vpack.c.b16 %v1854, %v1853
        %v1868 = vpack.c.b16 %v1856, %v1855
        %v1869 = vpack.c.b16 %v1858, %v1857
        %v1870 = vpack.c.b16 %v1860, %v1859
        %v1871 = vpack.c.b16 %v1862, %v1861
        %v1872 = vpack.c.b16 %v1864, %v1863
        %1881 = vmatpush.bf16.msra.mxu0 %v1872
        %1882 = vmatpush.bf16.msra.mxu0 %v1871
        %1883 = vmatpush.bf16.msra.mxu0 %v1870
        %1884 = vmatpush.bf16.msra.mxu0 %v1869
        %1885 = vmatpush.bf16.msra.mxu0 %v1868
        %1886 = vmatpush.bf16.msra.mxu0 %v1867
        %1887 = vmatpush.bf16.msra.mxu0 %v1866
        %1888 = vmatpush.bf16.msra.mxu0 %v1865
        %1889 = vmatmul.bf16.gmra.mxu0 %v1737
        %v1890 = vpop.f32.mrf.mxu0
        %v1891 = vadd.f32 %v1832, %v1890
        %v1892 = vpop.f32.mrf.mxu0
        %1893 = vdwg.mxu0
        %v1894 = vmul.f32 %v1813, %v1813
        %vm1895 = vcmask 1040384
        %v1896 = vsel %vm1895, %v1894, 0.0
        %1897 = vadd.xlane.f32.xlu0 %v1896
        %v1898 = vpop.xlane.xlu0 %1897
        %v1899 = vrsqrt.pop %v1898
        %v1900 = vmul.f32 %v1899, %v1898
        %v1901 = vmul.f32 %v1900, %v1899
        %v1902 = vmul.f32 0.5, %v1901
        %v1903 = vsub.f32 1.5, %v1902
        %v1904 = vmul.f32 %v1899, %v1903
        %v1905 = vmul.f32 %v1898, %v1904
        %vm1906 = vcmp.eq.f32.partialorder %v1898, inf
        %v1907 = vsel %vm1906, %v1898, %v1905
        %vm1908 = vcmp.eq.f32.partialorder %v1898, 0.0
        %v1909 = vand.u32 %v1898, 2147483648
        %v1910 = vsel %vm1908, %v1909, %v1907
        %v1911 = vmax.f32 %v1910, 1e-12
        %v1912 = vrcp.pop %v1911
        %v1913 = vmul.f32 %v1911, %v1912
        %v1914 = vsub.f32 1.0, %v1913
        %v1915 = vmul.f32 %v1912, %v1914
        %v1916 = vadd.f32 %v1912, %v1915
        %vm1917 = vweird.f32 %v1911
        %vm1918 = vweird.f32 %v1912
        %vm1919 = vmor %vm1917, %vm1918
        %v1920 = vsel %vm1919, %v1912, %v1916
        %v1921 = vand.u32 2147483647, %v1911
        %vm1922 = vcmp.eq.f32.partialorder %v1921, 8.507059e+37
        %v1923 = vand.u32 %v1911, 2147483648
        %v1924 = vor.u32 1.1754944e-38, %v1923
        %v1925 = vsel %vm1922, %v1924, %v1920
        %v1926 = vmul.f32 %v1813, %v1925
        %v1927 = vmul.f32 %v1891, %v1891
        %v1928 = vsel %vm1895, %v1927, 0.0
        %1929 = vadd.xlane.f32.xlu0 %v1928
        %v1930 = vpop.xlane.xlu0 %1929
        %v1931 = vrsqrt.pop %v1930
        %v1932 = vmul.f32 %v1931, %v1930
        %v1933 = vmul.f32 %v1932, %v1931
        %v1934 = vmul.f32 0.5, %v1933
        %v1935 = vsub.f32 1.5, %v1934
        %v1936 = vmul.f32 %v1931, %v1935
        %v1937 = vmul.f32 %v1930, %v1936
        %vm1938 = vcmp.eq.f32.partialorder %v1930, inf
        %v1939 = vsel %vm1938, %v1930, %v1937
        %vm1940 = vcmp.eq.f32.partialorder %v1930, 0.0
        %v1941 = vand.u32 %v1930, 2147483648
        %v1942 = vsel %vm1940, %v1941, %v1939
        %v1943 = vmax.f32 %v1942, 1e-12
        %v1944 = vrcp.pop %v1943
        %v1945 = vmul.f32 %v1943, %v1944
        %v1946 = vsub.f32 1.0, %v1945
        %v1947 = vmul.f32 %v1944, %v1946
        %v1948 = vadd.f32 %v1944, %v1947
        %vm1949 = vweird.f32 %v1943
        %vm1950 = vweird.f32 %v1944
        %vm1951 = vmor %vm1949, %vm1950
        %v1952 = vsel %vm1951, %v1944, %v1948
        %v1953 = vand.u32 2147483647, %v1943
        %vm1954 = vcmp.eq.f32.partialorder %v1953, 8.507059e+37
        %v1955 = vand.u32 %v1943, 2147483648
        %v1956 = vor.u32 1.1754944e-38, %v1955
        %v1957 = vsel %vm1954, %v1956, %v1952
        %v1958 = vmul.f32 %v1891, %v1957
        %1959 = vst [vmem:[%s585] sm:$0x1] %v1926
        %1960 = vst [vmem:[%s591] sm:$0x1] %v1958
        %s1961 = sand.u32 %s399, 1
        %s1962 = scalar_lea.sflag [#allocation3], %s1961
        %s1963 = sand.u32 %s399, 1
        %s1964 = scalar_lea.vmem [#allocation2], %s1963
        %s1965 = sand.u32 %s425, 1
        %s1966 = scalar_lea.sflag [#allocation5], %s1965
        %s1967 = sand.u32 %s425, 1
        %s1968 = scalar_lea.vmem [#allocation4], %s1967
        // Predicated region
        $region85: #{pair_supcon_forward.1} parent=83 // pred_check
          %p1969 = pneg %p409
        $region86: #{pair_supcon_forward.1} parent=83 // pred_check_branch
          %1971 = sbr.rel (%p1969) target = $region88
        $region87: #{pair_supcon_forward.1} parent=83 // pred_region
          %1973 = vsyncadd %s1962, 0
          %s1974 = scalar_lea.hbm %s16, %s35
          %s1976 = sshll.u32 %s1964, 4
          %s1977 = int_to_ptr.vmem [resolvable:$true] %s1976
          %s1978 = sshll.u32 %s1974, 4
          %s1979 = int_to_ptr.hbm [resolvable:$true] %s1978
          %1981 = dma.vmem_to_hbm [thread:$0]  %s1977, 16, %s1979, %s1962
        $region88: #{pair_supcon_forward.1} parent=83 // pred_fallthru
          _
        // Predicated region
        $region89: #{pair_supcon_forward.1} parent=83 // pred_check
          %p1982 = pneg %p435
        $region90: #{pair_supcon_forward.1} parent=83 // pred_check_branch
          %1984 = sbr.rel (%p1982) target = $region92
        $region91: #{pair_supcon_forward.1} parent=83 // pred_region
          %1986 = vsyncadd %s1966, 0
          %s1987 = scalar_lea.hbm %s17, %s35
          %s1989 = sshll.u32 %s1968, 4
          %s1990 = int_to_ptr.vmem [resolvable:$true] %s1989
          %s1991 = sshll.u32 %s1987, 4
          %s1992 = int_to_ptr.hbm [resolvable:$true] %s1991
          %1994 = dma.vmem_to_hbm [thread:$0]  %s1990, 16, %s1992, %s1966
        $region92: #{pair_supcon_forward.1} parent=83 // pred_fallthru
          _
      $region84: #{pair_supcon_forward.1} parent=5 // pred_fallthru
        _
      %p1995 = scmp.le.s32.totalorder 2, %s30
      // Predicated region
      $region93: #{pair_supcon_forward.1} parent=5 // pred_check
        %p1996 = pneg %p1995
      $region94: #{pair_supcon_forward.1} parent=5 // pred_check_branch
        %1998 = sbr.rel (%p1996) target = $region96
      $region95: #{pair_supcon_forward.1} parent=5 // pred_region
        %s1999 = ssub.s32 %s30, 2
        // Predicated region
        $region97: #{pair_supcon_forward.1} parent=95 // pred_check
          %p2000 = pneg %p415
        $region98: #{pair_supcon_forward.1} parent=95 // pred_check_branch
          %2002 = sbr.rel (%p2000) target = $region100
        $region99: #{pair_supcon_forward.1} parent=95 // pred_region
          %s2003 = sand.u32 %s400, 1
          %s2004 = scalar_lea.sflag [#allocation3], %s2003
          %s2005 = sand.u32 %s400, 1
          %s2006 = scalar_lea.vmem [#allocation2], %s2005
          %2008 = dma.done %s2004, 16
        $region100: #{pair_supcon_forward.1} parent=95 // pred_fallthru
          _
        // Predicated region
        $region101: #{pair_supcon_forward.1} parent=95 // pred_check
          %p2009 = pneg %p441
        $region102: #{pair_supcon_forward.1} parent=95 // pred_check_branch
          %2011 = sbr.rel (%p2009) target = $region104
        $region103: #{pair_supcon_forward.1} parent=95 // pred_region
          %s2012 = sand.u32 %s426, 1
          %s2013 = scalar_lea.sflag [#allocation5], %s2012
          %s2014 = sand.u32 %s426, 1
          %s2015 = scalar_lea.vmem [#allocation4], %s2014
          %2017 = dma.done %s2013, 16
        $region104: #{pair_supcon_forward.1} parent=95 // pred_fallthru
          _
      $region96: #{pair_supcon_forward.1} parent=5 // pred_fallthru
        _
    $region6: #{pair_supcon_forward.1} parent=1 // loop_footer
      %s34 = sadd.s32 1, %s30
    $region7: #{pair_supcon_forward.1} parent=1 // loop_footer_branch
      %29 = sbr.rel target = $region3
    $region8: #{pair_supcon_forward.1} parent=1 // loop_exit
      _
    %2018 = vsyncpa [#allocation3], 1
    %s2019 = scalar_lea.sflag [#allocation3], 1
    %2020 = vsyncpa %s2019, 1
    %2021 = vsyncpa [#allocation5], 1
    %s2022 = scalar_lea.sflag [#allocation5], 1
    %2023 = vsyncpa %s2022, 1

</llo_original>
